<compile_context>
chip_gen: v7x
topology: tpu7x:2x2x1
jax: 0.10.0
libtpu: 0.0.40
codegen_flags: <defaults>
</compile_context>

<pallas_src>
import functools

import jax
import jax.numpy as jnp
from jax.experimental import pallas as pl
from jax.experimental.pallas import tpu as pltpu


def _nasrnn_kernel(gx_ref, whid_ref, o_ref, c_scr, *,
                   seq_len, seq_chunk, unroll, masked_tail):
    """One (batch-block, time-chunk) grid step of the NAS-LSTM recurrence.

    gx_ref:   (Tc, Bb, 4Hp) precomputed x-projection chunk (mask folded in).
    whid_ref: (Hp, 4Hp)     masked/padded W_hid^T (matmul dtype, grid-invariant).
    o_ref:    (Bb, Hp)      output block, reused as the resident h_t carry (f32).
    c_scr:    (Bb, Hp)      VMEM scratch carrying c_t across time chunks (f32).
    """
    t_idx = pl.program_id(1)   # time-chunk axis (the batch axis may be "parallel")

    @pl.when(t_idx == 0)       # start of this batch block's time sweep
    def _():
        o_ref[...] = jnp.zeros_like(o_ref)
        c_scr[...] = jnp.zeros_like(c_scr)

    Hp = o_ref.shape[1]
    # Hoisted, grid-invariant weight value.  In the default bf16 path this is
    # Hp*4Hp*2 bytes (32 vregs at Hp=128) — small enough to stay resident
    # without starving the (bounded-unroll) loop body of registers.
    w_hid = whid_ref[...]

    def step(tt, carry):
        h, c = carry
        gates = gx_ref[tt].astype(jnp.float32) + jnp.dot(
            h.astype(w_hid.dtype), w_hid, preferred_element_type=jnp.float32
        )                                              # (Bb, 4Hp) f32
        # 128-lane-aligned gate slices (free vreg views thanks to Hp padding).
        i_g = jax.nn.sigmoid(gates[:, 0 * Hp:1 * Hp])
        f_g = jax.nn.sigmoid(gates[:, 1 * Hp:2 * Hp])
        c_g = jnp.tanh(gates[:, 2 * Hp:3 * Hp])
        o_g = jax.nn.sigmoid(gates[:, 3 * Hp:4 * Hp])
        c_new = f_g * c + i_g * c_g
        h_new = o_g * jnp.tanh(c_new)
        if masked_tail:
            # Timesteps past the true sequence length are zero-padded in gx;
            # keep the carries unchanged for them.
            valid = (t_idx * seq_chunk + tt) < seq_len
            h_new = jnp.where(valid, h_new, h)
            c_new = jnp.where(valid, c_new, c)
        return h_new, c_new

    h_f, c_f = jax.lax.fori_loop(
        0, seq_chunk, step, (o_ref[...], c_scr[...]), unroll=unroll
    )
    o_ref[...] = h_f
    c_scr[...] = c_f


def nasrnn_pallas(x_ncl, w_in, w_hid, ch_alphas, channel_mask, channel_candidate,
                  *, matmul_dtype=jnp.bfloat16, seq_chunk=None, batch_block=None,
                  unroll=8):
    """x_ncl: (B, Cin, T) as in the PyTorch module (NCL layout).
    w_in: (4H, Cin), w_hid: (4H, H) — nn.Linear weights (no bias).
    Returns (h_T, expected_channels, model_size + act_size)."""
    B, Cin, T = x_ncl.shape
    H = w_hid.shape[1]
    Hp = ((H + 127) // 128) * 128            # pad each gate block to 128 lanes
    itemsize = jnp.dtype(matmul_dtype).itemsize

    # ---- architecture weighting (plain JAX, stays on device — no host sync) ----
    ratio_w = jax.nn.softmax(ch_alphas, axis=-1)                    # (3,)
    soft_mask = jnp.sum(ratio_w[:, None] * channel_mask, axis=0)    # (H,)
    cand = jnp.asarray(channel_candidate, dtype=jnp.float32)
    expected_channels = jnp.sum(cand * ratio_w)
    model_size = expected_channels * 2 * 4
    act_size = T * expected_channels * 13 * 4

    # ---- fold the soft mask into weight columns, then pad H -> Hp ----
    # Valid because both Linears are bias-free; padding AFTER the mask fold
    # keeps padded lanes exactly zero through the recurrence.
    win_t = jnp.transpose(w_in).astype(jnp.float32)    # (Cin, 4H)
    whid_t = jnp.transpose(w_hid).astype(jnp.float32)  # (H, 4H)

    def mask_and_pad(wt):
        blocks = []
        for k in range(4):
            blk = wt[:, k * H:(k + 1) * H] * soft_mask[None, :]
            blk = jnp.pad(blk, ((0, 0), (0, Hp - H)))
            blocks.append(blk)
        return jnp.concatenate(blocks, axis=1)         # (rows, 4Hp)

    win_mp = mask_and_pad(win_t).astype(matmul_dtype)                          # (Cin, 4Hp)
    whid_mp = jnp.pad(mask_and_pad(whid_t), ((0, Hp - H), (0, 0)))             # (Hp, 4Hp)
    whid_mp = whid_mp.astype(matmul_dtype)

    # ---- time chunking: cdiv grid + zero-padded masked tail (no Tc=1 cliff) ----
    if seq_chunk is None:
        seq_chunk = 128
    Tc = max(1, min(int(seq_chunk), T))
    # keep the double-buffered gx chunk well inside VMEM at large B*Hp
    while Tc > 8 and 2 * Tc * B * 4 * Hp * itemsize > (24 << 20):
        Tc //= 2
    n_chunks = pl.cdiv(T, Tc)
    Tp = n_chunks * Tc
    masked_tail = (Tp != T)

    # ---- batch blocking (lets v7x shard the "parallel" axis over both TCs) ----
    if batch_block is None:
        batch_block = B // 2 if (B >= 16 and (B // 2) % 8 == 0) else B
    Bb = batch_block
    assert B % Bb == 0 and (Bb == B or Bb % 8 == 0), \
        "batch block must divide B and be sublane-aligned"

    # ---- hoist the input projection out of the recurrence ----
    # Transpose the *small* input (B,Cin,T) -> (T,B,Cin) so gx is produced
    # directly in the time-major layout the kernel streams (no extra HBM pass
    # over gx, the dominant streamed tensor).
    x_tbc = jnp.transpose(x_ncl, (2, 0, 1)).astype(matmul_dtype)   # (T, B, Cin)
    x_tbc = jnp.pad(x_tbc, ((0, Tp - T), (0, 0), (0, 0)))          # zero tail
    gx = jnp.einsum("tbc,cg->tbg", x_tbc, win_mp,
                    preferred_element_type=jnp.float32).astype(matmul_dtype)

    # ---- VMEM budget + cost estimate ----
    gx_block_bytes = Tc * Bb * 4 * Hp * itemsize
    w_bytes = Hp * 4 * Hp * itemsize
    out_block_bytes = Bb * Hp * 4
    vmem_limit = int(min(
        64 * 1024 * 1024,
        max(16 * 1024 * 1024,
            2 * gx_block_bytes + 2 * w_bytes + 4 * out_block_bytes + (2 << 20))))
    cost = pl.CostEstimate(
        flops=int(2 * T * B * Hp * 4 * Hp),          # recurrent h @ W_hid matmuls
        transcendentals=int(5 * T * B * Hp),         # 3 sigmoid + 2 tanh per step
        bytes_accessed=int(Tp * B * 4 * Hp * itemsize + w_bytes + B * Hp * 4),
    )

    grid_spec = pltpu.PrefetchScalarGridSpec(
        num_scalar_prefetch=0,
        grid=(B // Bb, n_chunks),
        in_specs=[
            # gx chunk for this (batch block, time chunk)
            pl.BlockSpec((Tc, Bb, 4 * Hp), lambda b, t: (t, b, 0)),
            # grid-invariant weight: constant index_map -> fetched once per core
            # and reused across all grid steps.
            pl.BlockSpec((Hp, 4 * Hp), lambda b, t: (0, 0)),
        ],
        out_specs=pl.BlockSpec((Bb, Hp), lambda b, t: (b, 0)),   # h carry / final h_T
        scratch_shapes=[pltpu.VMEM((Bb, Hp), jnp.float32)],      # c carry
    )

    kernel = functools.partial(
        _nasrnn_kernel,
        seq_len=T, seq_chunk=Tc, unroll=max(1, min(int(unroll), Tc)),
        masked_tail=masked_tail,
    )

    h_last_p = pl.pallas_call(
        kernel,
        out_shape=jax.ShapeDtypeStruct((B, Hp), jnp.float32),
        grid_spec=grid_spec,
        compiler_params=pltpu.CompilerParams(
            # batch blocks are independent -> "parallel" (v7x megacore sharding);
            # the time axis carries the recurrence through o_ref / c_scr, so it
            # MUST stay "arbitrary".
            dimension_semantics=("parallel", "arbitrary"),
            vmem_limit_bytes=vmem_limit,
        ),
        cost_estimate=cost,
    )(gx, whid_mp)

    h_last = h_last_p[:, :H]
    return h_last, expected_channels, model_size + act_size


def _reference(x_ncl, w_in, w_hid, soft_mask):
    """Pure-JAX reference mirroring the PyTorch forward."""
    B, Cin, T = x_ncl.shape
    H = w_hid.shape[1]
    x = jnp.transpose(x_ncl, (0, 2, 1))  # (B, T, Cin)
    h = jnp.zeros((B, H), jnp.float32)
    c = jnp.zeros((B, H), jnp.float32)
    for t in range(T):
        g = x[:, t, :] @ w_in.T + h @ w_hid.T
        i_g, f_g, c_g, o_g = jnp.split(g, 4, axis=1)
        i_g = jax.nn.sigmoid(i_g * soft_mask)
        f_g = jax.nn.sigmoid(f_g * soft_mask)
        o_g = jax.nn.sigmoid(o_g * soft_mask)
        c = f_g * c + i_g * jnp.tanh(c_g * soft_mask)
        h = o_g * jnp.tanh(c)
    return h


if __name__ == "__main__":
    B, Cin, H, T = 4, 16, 32, 8
    channel_ratio = [0.2, 0.6, 1.0]

    key = jax.random.PRNGKey(0)
    kx, kwi, kwh = jax.random.split(key, 3)

    x = jax.random.normal(kx, (B, Cin, T), dtype=jnp.float32)
    # nn.Linear weight shapes: (out_features, in_features)
    w_in = jax.random.normal(kwi, (4 * H, Cin), dtype=jnp.float32) * 0.1
    w_hid = jax.random.normal(kwh, (4 * H, H), dtype=jnp.float32) * 0.1

    # arch params: log_softmax(zeros) -> constant, softmax -> uniform
    ch_alphas = jax.nn.log_softmax(jnp.zeros((len(channel_ratio),), jnp.float32))

    # channel masks (3, H): first int(H*ratio) ones
    channel_candidate = [int(H * r) for r in channel_ratio]
    channel_mask = jnp.stack(
        [
            jnp.concatenate([jnp.ones((n,), jnp.float32),
                             jnp.zeros((H - n,), jnp.float32)])
            for n in channel_candidate
        ]
    )

    # pure-JAX reference
    ratio_w = jax.nn.softmax(ch_alphas)
    soft_mask = jnp.sum(ratio_w[:, None] * channel_mask, axis=0)
    h_ref = _reference(x, w_in, w_hid, soft_mask)

    # 1) exactness path: f32 matmuls, single time chunk
    h_f32, expected_channels, total_size = nasrnn_pallas(
        x, w_in, w_hid, ch_alphas, channel_mask, channel_candidate,
        matmul_dtype=jnp.float32)
    h_f32 = jax.block_until_ready(h_f32)
    assert jnp.allclose(h_f32, h_ref, atol=1e-5, rtol=1e-5), "f32 path mismatch"

    # 2) exactness of the cdiv + masked-tail chunking path (Tc=3, padded tail)
    h_tail, _, _ = nasrnn_pallas(
        x, w_in, w_hid, ch_alphas, channel_mask, channel_candidate,
        matmul_dtype=jnp.float32, seq_chunk=3)
    h_tail = jax.block_until_ready(h_tail)
    assert jnp.allclose(h_tail, h_ref, atol=1e-5, rtol=1e-5), "tail-chunk mismatch"

    # 3) default bf16 fast path: dtype-aware tolerance
    h_bf16, _, _ = nasrnn_pallas(
        x, w_in, w_hid, ch_alphas, channel_mask, channel_candidate)
    h_bf16 = jax.block_until_ready(h_bf16)
    assert jnp.allclose(h_bf16, h_ref, atol=3e-2, rtol=3e-2), "bf16 path mismatch"

    print("KERNEL_OK")
</pallas_src>

<mosaic_0001>
module attributes {stable_mosaic.version = 11 : i64} {
  func.func @_nasrnn_kernel(%arg0: i32, %arg1: i32, %arg2: memref<8x4x512xf32, #tpu.memory_space<vmem>>, %arg3: memref<128x512xf32, #tpu.memory_space<vmem>>, %arg4: memref<4x128xf32, #tpu.memory_space<vmem>>, %arg5: memref<4x128xf32, #tpu.memory_space<vmem>>) attributes {dimension_semantics = [#tpu.dimension_semantics<parallel>, #tpu.dimension_semantics<arbitrary>], iteration_bounds = array<i64: 1, 1>, scalar_prefetch = 0 : i64, scratch_operands = 1 : i64, tpu.core_type = #tpu.core_type<tc>, window_params = [{transform_indices = @transform_0, window_bounds = array<i64: 8, 4, 512>}, {pipeline_mode = #tpu.pipeline_mode<synchronous>, transform_indices = @transform_1, window_bounds = array<i64: 128, 512>}, {transform_indices = @transform_2, window_bounds = array<i64: 4, 128>}]} {
    %c0_i32 = arith.constant 0 : i32
    %0 = arith.cmpi eq, %arg1, %c0_i32 : i32
    %1 = arith.extui %0 : i1 to i32
    %c0_i32_0 = arith.constant 0 : i32
    %2 = arith.cmpi ne, %1, %c0_i32_0 : i32
    scf.if %2 {
      %cst_58 = arith.constant 0.000000e+00 : f32
      %248 = vector.broadcast %cst_58 : f32 to vector<4x128xf32>
      %c0_59 = arith.constant 0 : index
      %c0_60 = arith.constant 0 : index
      %249 = vector.load %arg4[%c0_59, %c0_60] : memref<4x128xf32, #tpu.memory_space<vmem>>, vector<4x128xf32>
      tpu.vector_store %arg4[%c0_59, %c0_60], %248 {strides = array<i32>} : memref<4x128xf32, #tpu.memory_space<vmem>>, vector<4x128xf32>,
      %cst_61 = arith.constant 0.000000e+00 : f32
      %250 = vector.broadcast %cst_61 : f32 to vector<4x128xf32>
      %c0_62 = arith.constant 0 : index
      %c0_63 = arith.constant 0 : index
      %251 = vector.load %arg5[%c0_62, %c0_63] : memref<4x128xf32, #tpu.memory_space<vmem>>, vector<4x128xf32>
      tpu.vector_store %arg5[%c0_62, %c0_63], %250 {strides = array<i32>} : memref<4x128xf32, #tpu.memory_space<vmem>>, vector<4x128xf32>,
    } else {
    }
    %c0 = arith.constant 0 : index
    %c0_1 = arith.constant 0 : index
    %3 = vector.load %arg3[%c0, %c0_1] : memref<128x512xf32, #tpu.memory_space<vmem>>, vector<128x512xf32>
    %c0_2 = arith.constant 0 : index
    %c0_3 = arith.constant 0 : index
    %4 = vector.load %arg4[%c0_2, %c0_3] : memref<4x128xf32, #tpu.memory_space<vmem>>, vector<4x128xf32>
    %c0_4 = arith.constant 0 : index
    %c0_5 = arith.constant 0 : index
    %5 = vector.load %arg5[%c0_4, %c0_5] : memref<4x128xf32, #tpu.memory_space<vmem>>, vector<4x128xf32>
    %c0_i32_6 = arith.constant 0 : i32
    %6 = arith.index_cast %c0_i32_6 : i32 to index
    %c0_7 = arith.constant 0 : index
    %c0_8 = arith.constant 0 : index
    %7 = vector.load %arg2[%6, %c0_7, %c0_8] : memref<8x4x512xf32, #tpu.memory_space<vmem>>, vector<1x4x512xf32>
    %8 = vector.shape_cast %7 : vector<1x4x512xf32> to vector<4x512xf32>
    %cst = arith.constant dense<0.000000e+00> : vector<4x512xf32>
    %9 = tpu.matmul %4, %3, %cst {dimension_numbers = #tpu.dot_dimension_numbers<[1], [0], [0], [1], [0, 0, 1, 1], [], []>} : vector<4x128xf32>, vector<128x512xf32>, vector<4x512xf32> -> vector<4x512xf32>
    %10 = arith.addf %8, %9 : vector<4x512xf32>
    %11 = vector.extract_strided_slice %10 {offsets = [0, 0], sizes = [4, 128], strides = [1, 1]} : vector<4x512xf32> to vector<4x128xf32>
    %12 = arith.negf %11 : vector<4x128xf32>
    %13 = math.exp %12 : vector<4x128xf32>
    %cst_9 = arith.constant 1.000000e+00 : f32
    %14 = vector.broadcast %cst_9 : f32 to vector<4x128xf32>
    %15 = arith.addf %14, %13 : vector<4x128xf32>
    %16 = arith.divf %14, %15 : vector<4x128xf32>
    %17 = vector.extract_strided_slice %10 {offsets = [0, 128], sizes = [4, 128], strides = [1, 1]} : vector<4x512xf32> to vector<4x128xf32>
    %18 = arith.negf %17 : vector<4x128xf32>
    %19 = math.exp %18 : vector<4x128xf32>
    %cst_10 = arith.constant 1.000000e+00 : f32
    %20 = vector.broadcast %cst_10 : f32 to vector<4x128xf32>
    %21 = arith.addf %20, %19 : vector<4x128xf32>
    %22 = arith.divf %20, %21 : vector<4x128xf32>
    %23 = vector.extract_strided_slice %10 {offsets = [0, 256], sizes = [4, 128], strides = [1, 1]} : vector<4x512xf32> to vector<4x128xf32>
    %24 = math.tanh %23 : vector<4x128xf32>
    %25 = vector.extract_strided_slice %10 {offsets = [0, 384], sizes = [4, 128], strides = [1, 1]} : vector<4x512xf32> to vector<4x128xf32>
    %26 = arith.negf %25 : vector<4x128xf32>
    %27 = math.exp %26 : vector<4x128xf32>
    %cst_11 = arith.constant 1.000000e+00 : f32
    %28 = vector.broadcast %cst_11 : f32 to vector<4x128xf32>
    %29 = arith.addf %28, %27 : vector<4x128xf32>
    %30 = arith.divf %28, %29 : vector<4x128xf32>
    %31 = arith.mulf %22, %5 : vector<4x128xf32>
    %32 = arith.mulf %16, %24 : vector<4x128xf32>
    %33 = arith.addf %31, %32 : vector<4x128xf32>
    %34 = math.tanh %33 : vector<4x128xf32>
    %35 = arith.mulf %30, %34 : vector<4x128xf32>
    %c1_i32 = arith.constant 1 : i32
    %36 = arith.index_cast %c1_i32 : i32 to index
    %c0_12 = arith.constant 0 : index
    %c0_13 = arith.constant 0 : index
    %37 = vector.load %arg2[%36, %c0_12, %c0_13] : memref<8x4x512xf32, #tpu.memory_space<vmem>>, vector<1x4x512xf32>
    %38 = vector.shape_cast %37 : vector<1x4x512xf32> to vector<4x512xf32>
    %cst_14 = arith.constant dense<0.000000e+00> : vector<4x512xf32>
    %39 = tpu.matmul %35, %3, %cst_14 {dimension_numbers = #tpu.dot_dimension_numbers<[1], [0], [0], [1], [0, 0, 1, 1], [], []>} : vector<4x128xf32>, vector<128x512xf32>, vector<4x512xf32> -> vector<4x512xf32>
    %40 = arith.addf %38, %39 : vector<4x512xf32>
    %41 = vector.extract_strided_slice %40 {offsets = [0, 0], sizes = [4, 128], strides = [1, 1]} : vector<4x512xf32> to vector<4x128xf32>
    %42 = arith.negf %41 : vector<4x128xf32>
    %43 = math.exp %42 : vector<4x128xf32>
    %cst_15 = arith.constant 1.000000e+00 : f32
    %44 = vector.broadcast %cst_15 : f32 to vector<4x128xf32>
    %45 = arith.addf %44, %43 : vector<4x128xf32>
    %46 = arith.divf %44, %45 : vector<4x128xf32>
    %47 = vector.extract_strided_slice %40 {offsets = [0, 128], sizes = [4, 128], strides = [1, 1]} : vector<4x512xf32> to vector<4x128xf32>
    %48 = arith.negf %47 : vector<4x128xf32>
    %49 = math.exp %48 : vector<4x128xf32>
    %cst_16 = arith.constant 1.000000e+00 : f32
    %50 = vector.broadcast %cst_16 : f32 to vector<4x128xf32>
    %51 = arith.addf %50, %49 : vector<4x128xf32>
    %52 = arith.divf %50, %51 : vector<4x128xf32>
    %53 = vector.extract_strided_slice %40 {offsets = [0, 256], sizes = [4, 128], strides = [1, 1]} : vector<4x512xf32> to vector<4x128xf32>
    %54 = math.tanh %53 : vector<4x128xf32>
    %55 = vector.extract_strided_slice %40 {offsets = [0, 384], sizes = [4, 128], strides = [1, 1]} : vector<4x512xf32> to vector<4x128xf32>
    %56 = arith.negf %55 : vector<4x128xf32>
    %57 = math.exp %56 : vector<4x128xf32>
    %cst_17 = arith.constant 1.000000e+00 : f32
    %58 = vector.broadcast %cst_17 : f32 to vector<4x128xf32>
    %59 = arith.addf %58, %57 : vector<4x128xf32>
    %60 = arith.divf %58, %59 : vector<4x128xf32>
    %61 = arith.mulf %52, %33 : vector<4x128xf32>
    %62 = arith.mulf %46, %54 : vector<4x128xf32>
    %63 = arith.addf %61, %62 : vector<4x128xf32>
    %64 = math.tanh %63 : vector<4x128xf32>
    %65 = arith.mulf %60, %64 : vector<4x128xf32>
    %c2_i32 = arith.constant 2 : i32
    %66 = arith.index_cast %c2_i32 : i32 to index
    %c0_18 = arith.constant 0 : index
    %c0_19 = arith.constant 0 : index
    %67 = vector.load %arg2[%66, %c0_18, %c0_19] : memref<8x4x512xf32, #tpu.memory_space<vmem>>, vector<1x4x512xf32>
    %68 = vector.shape_cast %67 : vector<1x4x512xf32> to vector<4x512xf32>
    %cst_20 = arith.constant dense<0.000000e+00> : vector<4x512xf32>
    %69 = tpu.matmul %65, %3, %cst_20 {dimension_numbers = #tpu.dot_dimension_numbers<[1], [0], [0], [1], [0, 0, 1, 1], [], []>} : vector<4x128xf32>, vector<128x512xf32>, vector<4x512xf32> -> vector<4x512xf32>
    %70 = arith.addf %68, %69 : vector<4x512xf32>
    %71 = vector.extract_strided_slice %70 {offsets = [0, 0], sizes = [4, 128], strides = [1, 1]} : vector<4x512xf32> to vector<4x128xf32>
    %72 = arith.negf %71 : vector<4x128xf32>
    %73 = math.exp %72 : vector<4x128xf32>
    %cst_21 = arith.constant 1.000000e+00 : f32
    %74 = vector.broadcast %cst_21 : f32 to vector<4x128xf32>
    %75 = arith.addf %74, %73 : vector<4x128xf32>
    %76 = arith.divf %74, %75 : vector<4x128xf32>
    %77 = vector.extract_strided_slice %70 {offsets = [0, 128], sizes = [4, 128], strides = [1, 1]} : vector<4x512xf32> to vector<4x128xf32>
    %78 = arith.negf %77 : vector<4x128xf32>
    %79 = math.exp %78 : vector<4x128xf32>
    %cst_22 = arith.constant 1.000000e+00 : f32
    %80 = vector.broadcast %cst_22 : f32 to vector<4x128xf32>
    %81 = arith.addf %80, %79 : vector<4x128xf32>
    %82 = arith.divf %80, %81 : vector<4x128xf32>
    %83 = vector.extract_strided_slice %70 {offsets = [0, 256], sizes = [4, 128], strides = [1, 1]} : vector<4x512xf32> to vector<4x128xf32>
    %84 = math.tanh %83 : vector<4x128xf32>
    %85 = vector.extract_strided_slice %70 {offsets = [0, 384], sizes = [4, 128], strides = [1, 1]} : vector<4x512xf32> to vector<4x128xf32>
    %86 = arith.negf %85 : vector<4x128xf32>
    %87 = math.exp %86 : vector<4x128xf32>
    %cst_23 = arith.constant 1.000000e+00 : f32
    %88 = vector.broadcast %cst_23 : f32 to vector<4x128xf32>
    %89 = arith.addf %88, %87 : vector<4x128xf32>
    %90 = arith.divf %88, %89 : vector<4x128xf32>
    %91 = arith.mulf %82, %63 : vector<4x128xf32>
    %92 = arith.mulf %76, %84 : vector<4x128xf32>
    %93 = arith.addf %91, %92 : vector<4x128xf32>
    %94 = math.tanh %93 : vector<4x128xf32>
    %95 = arith.mulf %90, %94 : vector<4x128xf32>
    %c3_i32 = arith.constant 3 : i32
    %96 = arith.index_cast %c3_i32 : i32 to index
    %c0_24 = arith.constant 0 : index
    %c0_25 = arith.constant 0 : index
    %97 = vector.load %arg2[%96, %c0_24, %c0_25] : memref<8x4x512xf32, #tpu.memory_space<vmem>>, vector<1x4x512xf32>
    %98 = vector.shape_cast %97 : vector<1x4x512xf32> to vector<4x512xf32>
    %cst_26 = arith.constant dense<0.000000e+00> : vector<4x512xf32>
    %99 = tpu.matmul %95, %3, %cst_26 {dimension_numbers = #tpu.dot_dimension_numbers<[1], [0], [0], [1], [0, 0, 1, 1], [], []>} : vector<4x128xf32>, vector<128x512xf32>, vector<4x512xf32> -> vector<4x512xf32>
    %100 = arith.addf %98, %99 : vector<4x512xf32>
    %101 = vector.extract_strided_slice %100 {offsets = [0, 0], sizes = [4, 128], strides = [1, 1]} : vector<4x512xf32> to vector<4x128xf32>
    %102 = arith.negf %101 : vector<4x128xf32>
    %103 = math.exp %102 : vector<4x128xf32>
    %cst_27 = arith.constant 1.000000e+00 : f32
    %104 = vector.broadcast %cst_27 : f32 to vector<4x128xf32>
    %105 = arith.addf %104, %103 : vector<4x128xf32>
    %106 = arith.divf %104, %105 : vector<4x128xf32>
    %107 = vector.extract_strided_slice %100 {offsets = [0, 128], sizes = [4, 128], strides = [1, 1]} : vector<4x512xf32> to vector<4x128xf32>
    %108 = arith.negf %107 : vector<4x128xf32>
    %109 = math.exp %108 : vector<4x128xf32>
    %cst_28 = arith.constant 1.000000e+00 : f32
    %110 = vector.broadcast %cst_28 : f32 to vector<4x128xf32>
    %111 = arith.addf %110, %109 : vector<4x128xf32>
    %112 = arith.divf %110, %111 : vector<4x128xf32>
    %113 = vector.extract_strided_slice %100 {offsets = [0, 256], sizes = [4, 128], strides = [1, 1]} : vector<4x512xf32> to vector<4x128xf32>
    %114 = math.tanh %113 : vector<4x128xf32>
    %115 = vector.extract_strided_slice %100 {offsets = [0, 384], sizes = [4, 128], strides = [1, 1]} : vector<4x512xf32> to vector<4x128xf32>
    %116 = arith.negf %115 : vector<4x128xf32>
    %117 = math.exp %116 : vector<4x128xf32>
    %cst_29 = arith.constant 1.000000e+00 : f32
    %118 = vector.broadcast %cst_29 : f32 to vector<4x128xf32>
    %119 = arith.addf %118, %117 : vector<4x128xf32>
    %120 = arith.divf %118, %119 : vector<4x128xf32>
    %121 = arith.mulf %112, %93 : vector<4x128xf32>
    %122 = arith.mulf %106, %114 : vector<4x128xf32>
    %123 = arith.addf %121, %122 : vector<4x128xf32>
    %124 = math.tanh %123 : vector<4x128xf32>
    %125 = arith.mulf %120, %124 : vector<4x128xf32>
    %c4_i32 = arith.constant 4 : i32
    %126 = arith.index_cast %c4_i32 : i32 to index
    %c0_30 = arith.constant 0 : index
    %c0_31 = arith.constant 0 : index
    %127 = vector.load %arg2[%126, %c0_30, %c0_31] : memref<8x4x512xf32, #tpu.memory_space<vmem>>, vector<1x4x512xf32>
    %128 = vector.shape_cast %127 : vector<1x4x512xf32> to vector<4x512xf32>
    %cst_32 = arith.constant dense<0.000000e+00> : vector<4x512xf32>
    %129 = tpu.matmul %125, %3, %cst_32 {dimension_numbers = #tpu.dot_dimension_numbers<[1], [0], [0], [1], [0, 0, 1, 1], [], []>} : vector<4x128xf32>, vector<128x512xf32>, vector<4x512xf32> -> vector<4x512xf32>
    %130 = arith.addf %128, %129 : vector<4x512xf32>
    %131 = vector.extract_strided_slice %130 {offsets = [0, 0], sizes = [4, 128], strides = [1, 1]} : vector<4x512xf32> to vector<4x128xf32>
    %132 = arith.negf %131 : vector<4x128xf32>
    %133 = math.exp %132 : vector<4x128xf32>
    %cst_33 = arith.constant 1.000000e+00 : f32
    %134 = vector.broadcast %cst_33 : f32 to vector<4x128xf32>
    %135 = arith.addf %134, %133 : vector<4x128xf32>
    %136 = arith.divf %134, %135 : vector<4x128xf32>
    %137 = vector.extract_strided_slice %130 {offsets = [0, 128], sizes = [4, 128], strides = [1, 1]} : vector<4x512xf32> to vector<4x128xf32>
    %138 = arith.negf %137 : vector<4x128xf32>
    %139 = math.exp %138 : vector<4x128xf32>
    %cst_34 = arith.constant 1.000000e+00 : f32
    %140 = vector.broadcast %cst_34 : f32 to vector<4x128xf32>
    %141 = arith.addf %140, %139 : vector<4x128xf32>
    %142 = arith.divf %140, %141 : vector<4x128xf32>
    %143 = vector.extract_strided_slice %130 {offsets = [0, 256], sizes = [4, 128], strides = [1, 1]} : vector<4x512xf32> to vector<4x128xf32>
    %144 = math.tanh %143 : vector<4x128xf32>
    %145 = vector.extract_strided_slice %130 {offsets = [0, 384], sizes = [4, 128], strides = [1, 1]} : vector<4x512xf32> to vector<4x128xf32>
    %146 = arith.negf %145 : vector<4x128xf32>
    %147 = math.exp %146 : vector<4x128xf32>
    %cst_35 = arith.constant 1.000000e+00 : f32
    %148 = vector.broadcast %cst_35 : f32 to vector<4x128xf32>
    %149 = arith.addf %148, %147 : vector<4x128xf32>
    %150 = arith.divf %148, %149 : vector<4x128xf32>
    %151 = arith.mulf %142, %123 : vector<4x128xf32>
    %152 = arith.mulf %136, %144 : vector<4x128xf32>
    %153 = arith.addf %151, %152 : vector<4x128xf32>
    %154 = math.tanh %153 : vector<4x128xf32>
    %155 = arith.mulf %150, %154 : vector<4x128xf32>
    %c5_i32 = arith.constant 5 : i32
    %156 = arith.index_cast %c5_i32 : i32 to index
    %c0_36 = arith.constant 0 : index
    %c0_37 = arith.constant 0 : index
    %157 = vector.load %arg2[%156, %c0_36, %c0_37] : memref<8x4x512xf32, #tpu.memory_space<vmem>>, vector<1x4x512xf32>
    %158 = vector.shape_cast %157 : vector<1x4x512xf32> to vector<4x512xf32>
    %cst_38 = arith.constant dense<0.000000e+00> : vector<4x512xf32>
    %159 = tpu.matmul %155, %3, %cst_38 {dimension_numbers = #tpu.dot_dimension_numbers<[1], [0], [0], [1], [0, 0, 1, 1], [], []>} : vector<4x128xf32>, vector<128x512xf32>, vector<4x512xf32> -> vector<4x512xf32>
    %160 = arith.addf %158, %159 : vector<4x512xf32>
    %161 = vector.extract_strided_slice %160 {offsets = [0, 0], sizes = [4, 128], strides = [1, 1]} : vector<4x512xf32> to vector<4x128xf32>
    %162 = arith.negf %161 : vector<4x128xf32>
    %163 = math.exp %162 : vector<4x128xf32>
    %cst_39 = arith.constant 1.000000e+00 : f32
    %164 = vector.broadcast %cst_39 : f32 to vector<4x128xf32>
    %165 = arith.addf %164, %163 : vector<4x128xf32>
    %166 = arith.divf %164, %165 : vector<4x128xf32>
    %167 = vector.extract_strided_slice %160 {offsets = [0, 128], sizes = [4, 128], strides = [1, 1]} : vector<4x512xf32> to vector<4x128xf32>
    %168 = arith.negf %167 : vector<4x128xf32>
    %169 = math.exp %168 : vector<4x128xf32>
    %cst_40 = arith.constant 1.000000e+00 : f32
    %170 = vector.broadcast %cst_40 : f32 to vector<4x128xf32>
    %171 = arith.addf %170, %169 : vector<4x128xf32>
    %172 = arith.divf %170, %171 : vector<4x128xf32>
    %173 = vector.extract_strided_slice %160 {offsets = [0, 256], sizes = [4, 128], strides = [1, 1]} : vector<4x512xf32> to vector<4x128xf32>
    %174 = math.tanh %173 : vector<4x128xf32>
    %175 = vector.extract_strided_slice %160 {offsets = [0, 384], sizes = [4, 128], strides = [1, 1]} : vector<4x512xf32> to vector<4x128xf32>
    %176 = arith.negf %175 : vector<4x128xf32>
    %177 = math.exp %176 : vector<4x128xf32>
    %cst_41 = arith.constant 1.000000e+00 : f32
    %178 = vector.broadcast %cst_41 : f32 to vector<4x128xf32>
    %179 = arith.addf %178, %177 : vector<4x128xf32>
    %180 = arith.divf %178, %179 : vector<4x128xf32>
    %181 = arith.mulf %172, %153 : vector<4x128xf32>
    %182 = arith.mulf %166, %174 : vector<4x128xf32>
    %183 = arith.addf %181, %182 : vector<4x128xf32>
    %184 = math.tanh %183 : vector<4x128xf32>
    %185 = arith.mulf %180, %184 : vector<4x128xf32>
    %c6_i32 = arith.constant 6 : i32
    %186 = arith.index_cast %c6_i32 : i32 to index
    %c0_42 = arith.constant 0 : index
    %c0_43 = arith.constant 0 : index
    %187 = vector.load %arg2[%186, %c0_42, %c0_43] : memref<8x4x512xf32, #tpu.memory_space<vmem>>, vector<1x4x512xf32>
    %188 = vector.shape_cast %187 : vector<1x4x512xf32> to vector<4x512xf32>
    %cst_44 = arith.constant dense<0.000000e+00> : vector<4x512xf32>
    %189 = tpu.matmul %185, %3, %cst_44 {dimension_numbers = #tpu.dot_dimension_numbers<[1], [0], [0], [1], [0, 0, 1, 1], [], []>} : vector<4x128xf32>, vector<128x512xf32>, vector<4x512xf32> -> vector<4x512xf32>
    %190 = arith.addf %188, %189 : vector<4x512xf32>
    %191 = vector.extract_strided_slice %190 {offsets = [0, 0], sizes = [4, 128], strides = [1, 1]} : vector<4x512xf32> to vector<4x128xf32>
    %192 = arith.negf %191 : vector<4x128xf32>
    %193 = math.exp %192 : vector<4x128xf32>
    %cst_45 = arith.constant 1.000000e+00 : f32
    %194 = vector.broadcast %cst_45 : f32 to vector<4x128xf32>
    %195 = arith.addf %194, %193 : vector<4x128xf32>
    %196 = arith.divf %194, %195 : vector<4x128xf32>
    %197 = vector.extract_strided_slice %190 {offsets = [0, 128], sizes = [4, 128], strides = [1, 1]} : vector<4x512xf32> to vector<4x128xf32>
    %198 = arith.negf %197 : vector<4x128xf32>
    %199 = math.exp %198 : vector<4x128xf32>
    %cst_46 = arith.constant 1.000000e+00 : f32
    %200 = vector.broadcast %cst_46 : f32 to vector<4x128xf32>
    %201 = arith.addf %200, %199 : vector<4x128xf32>
    %202 = arith.divf %200, %201 : vector<4x128xf32>
    %203 = vector.extract_strided_slice %190 {offsets = [0, 256], sizes = [4, 128], strides = [1, 1]} : vector<4x512xf32> to vector<4x128xf32>
    %204 = math.tanh %203 : vector<4x128xf32>
    %205 = vector.extract_strided_slice %190 {offsets = [0, 384], sizes = [4, 128], strides = [1, 1]} : vector<4x512xf32> to vector<4x128xf32>
    %206 = arith.negf %205 : vector<4x128xf32>
    %207 = math.exp %206 : vector<4x128xf32>
    %cst_47 = arith.constant 1.000000e+00 : f32
    %208 = vector.broadcast %cst_47 : f32 to vector<4x128xf32>
    %209 = arith.addf %208, %207 : vector<4x128xf32>
    %210 = arith.divf %208, %209 : vector<4x128xf32>
    %211 = arith.mulf %202, %183 : vector<4x128xf32>
    %212 = arith.mulf %196, %204 : vector<4x128xf32>
    %213 = arith.addf %211, %212 : vector<4x128xf32>
    %214 = math.tanh %213 : vector<4x128xf32>
    %215 = arith.mulf %210, %214 : vector<4x128xf32>
    %c7_i32 = arith.constant 7 : i32
    %216 = arith.index_cast %c7_i32 : i32 to index
    %c0_48 = arith.constant 0 : index
    %c0_49 = arith.constant 0 : index
    %217 = vector.load %arg2[%216, %c0_48, %c0_49] : memref<8x4x512xf32, #tpu.memory_space<vmem>>, vector<1x4x512xf32>
    %218 = vector.shape_cast %217 : vector<1x4x512xf32> to vector<4x512xf32>
    %cst_50 = arith.constant dense<0.000000e+00> : vector<4x512xf32>
    %219 = tpu.matmul %215, %3, %cst_50 {dimension_numbers = #tpu.dot_dimension_numbers<[1], [0], [0], [1], [0, 0, 1, 1], [], []>} : vector<4x128xf32>, vector<128x512xf32>, vector<4x512xf32> -> vector<4x512xf32>
    %220 = arith.addf %218, %219 : vector<4x512xf32>
    %221 = vector.extract_strided_slice %220 {offsets = [0, 0], sizes = [4, 128], strides = [1, 1]} : vector<4x512xf32> to vector<4x128xf32>
    %222 = arith.negf %221 : vector<4x128xf32>
    %223 = math.exp %222 : vector<4x128xf32>
    %cst_51 = arith.constant 1.000000e+00 : f32
    %224 = vector.broadcast %cst_51 : f32 to vector<4x128xf32>
    %225 = arith.addf %224, %223 : vector<4x128xf32>
    %226 = arith.divf %224, %225 : vector<4x128xf32>
    %227 = vector.extract_strided_slice %220 {offsets = [0, 128], sizes = [4, 128], strides = [1, 1]} : vector<4x512xf32> to vector<4x128xf32>
    %228 = arith.negf %227 : vector<4x128xf32>
    %229 = math.exp %228 : vector<4x128xf32>
    %cst_52 = arith.constant 1.000000e+00 : f32
    %230 = vector.broadcast %cst_52 : f32 to vector<4x128xf32>
    %231 = arith.addf %230, %229 : vector<4x128xf32>
    %232 = arith.divf %230, %231 : vector<4x128xf32>
    %233 = vector.extract_strided_slice %220 {offsets = [0, 256], sizes = [4, 128], strides = [1, 1]} : vector<4x512xf32> to vector<4x128xf32>
    %234 = math.tanh %233 : vector<4x128xf32>
    %235 = vector.extract_strided_slice %220 {offsets = [0, 384], sizes = [4, 128], strides = [1, 1]} : vector<4x512xf32> to vector<4x128xf32>
    %236 = arith.negf %235 : vector<4x128xf32>
    %237 = math.exp %236 : vector<4x128xf32>
    %cst_53 = arith.constant 1.000000e+00 : f32
    %238 = vector.broadcast %cst_53 : f32 to vector<4x128xf32>
    %239 = arith.addf %238, %237 : vector<4x128xf32>
    %240 = arith.divf %238, %239 : vector<4x128xf32>
    %241 = arith.mulf %232, %213 : vector<4x128xf32>
    %242 = arith.mulf %226, %234 : vector<4x128xf32>
    %243 = arith.addf %241, %242 : vector<4x128xf32>
    %244 = math.tanh %243 : vector<4x128xf32>
    %245 = arith.mulf %240, %244 : vector<4x128xf32>
    %c8_i32 = arith.constant 8 : i32
    %c0_54 = arith.constant 0 : index
    %c0_55 = arith.constant 0 : index
    %246 = vector.load %arg4[%c0_54, %c0_55] : memref<4x128xf32, #tpu.memory_space<vmem>>, vector<4x128xf32>
    tpu.vector_store %arg4[%c0_54, %c0_55], %245 {strides = array<i32>} : memref<4x128xf32, #tpu.memory_space<vmem>>, vector<4x128xf32>,
    %c0_56 = arith.constant 0 : index
    %c0_57 = arith.constant 0 : index
    %247 = vector.load %arg5[%c0_56, %c0_57] : memref<4x128xf32, #tpu.memory_space<vmem>>, vector<4x128xf32>
    tpu.vector_store %arg5[%c0_56, %c0_57], %243 {strides = array<i32>} : memref<4x128xf32, #tpu.memory_space<vmem>>, vector<4x128xf32>,
    return
  }
  func.func @transform_0(%arg0: i32, %arg1: i32) -> (i32, i32, i32) {
    %c0_i32 = arith.constant 0 : i32
    %c0_i32_0 = arith.constant 0 : i32
    return %arg1, %arg0, %c0_i32 : i32, i32, i32
  }
  func.func @transform_1(%arg0: i32, %arg1: i32) -> (i32, i32) {
    %c0_i32 = arith.constant 0 : i32
    %c0_i32_0 = arith.constant 0 : i32
    %c0_i32_1 = arith.constant 0 : i32
    return %c0_i32, %c0_i32_0 : i32, i32
  }
  func.func @transform_2(%arg0: i32, %arg1: i32) -> (i32, i32) {
    %c0_i32 = arith.constant 0 : i32
    %c0_i32_0 = arith.constant 0 : i32
    return %arg0, %c0_i32 : i32, i32
  }
}

</mosaic_0001>

<llo_original>
// kernel: tpu_custom_call.1
$region0: #{tpu_custom_call.1}
  #allocation0 [shape = 'u32[]', space=smem, size = 0x4, offset = 0x4, fixed_abs, tag = 'smem constant byte address 0x4 - core index']
  #allocation1 [shape = 'u32[144,128]{1,0:T(1,128)}', space=vmem, size = 0x12000, scoped, tag = 'internal scratch']
  #allocation2 [shape = 'f32[4,128]{1,0:T(4,128)}', space=vmem, size = 0x800, scoped, tag = 'scratch operand']
  %s0 = inlined_call_operand.hbm [shape: f32[8,4,512], index: 0, kind: input, shape index: {}]
  %s1 = inlined_call_operand.hbm [shape: f32[128,512], index: 1, kind: input, shape index: {}]
  %s2 = inlined_call_operand.hbm [shape: f32[4,128], index: 2, kind: output, shape index: {}]
  %s3 = sld [smem:[#allocation0]]
  $region30: #{tpu_custom_call.1} parent=0
    _
  %s5 = ssub.s32 1, %s3
  %s6 = scalar_select 0, %s5, %s3
  $region1: #{tpu_custom_call.1} parent=0
    #allocation3 [shape = 'u8[65536]{0}', space=vmem, size = 0x10000, scoped, tag = 'input window, operand 0, single buffered']
    #allocation4 [shape = 's32[1]{0}', space=sflag, size = 0x4, scoped, tag = 'scoped memory for tpu_custom_call.1']
    #allocation5 [shape = 's32[1]{0}', space=sflag, size = 0x4, scoped, tag = 'scoped memory for tpu_custom_call.1']
    #allocation6 [shape = 'u8[262144]{0}', space=vmem, size = 0x40000, scoped, tag = 'input window, operand 1, single buffered']
    #allocation7 [shape = 's32[1]{0}', space=sflag, size = 0x4, scoped, tag = 'scoped memory for tpu_custom_call.1']
    #allocation8 [shape = 'u8[2048]{0}', space=vmem, size = 0x800, scoped, tag = 'output window, operand 0, single buffered']
    %7 = vsyncpa [#allocation4], 0
    %8 = vsyncpa [#allocation7], 0
    %9 = vsyncpa [#allocation5], 0
    // Predicated region
    $region2: #{tpu_custom_call.1} parent=1 // pred_check
      _
    $region3: #{tpu_custom_call.1} parent=1 // pred_check_branch
      %11 = sbr.rel (0) target = $region5
    $region4: #{tpu_custom_call.1} parent=1 // pred_region
      %s13 = ssub.s32 2048, 2048
      %14 = vsyncadd [#allocation4], %s13
      %s15 = sshll.u32 [#allocation3], 4
      %s16 = int_to_ptr.vmem [resolvable:$true] %s15
      %21 = dma.hbm_to_vmem [thread:$0]  %s0, 2048, %s16, [#allocation4], 256, 256, 16
    $region5: #{tpu_custom_call.1} parent=1 // pred_fallthru
      _
    // Predicated region
    $region6: #{tpu_custom_call.1} parent=1 // pred_check
      _
    $region7: #{tpu_custom_call.1} parent=1 // pred_check_branch
      %23 = sbr.rel (0) target = $region9
    $region8: #{tpu_custom_call.1} parent=1 // pred_region
      %s25 = ssub.s32 8192, 8192
      %26 = vsyncadd [#allocation7], %s25
      %s27 = sshll.u32 [#allocation6], 4
      %s28 = int_to_ptr.vmem [resolvable:$true] %s27
      %33 = dma.hbm_to_vmem [thread:$0]  %s1, 8192, %s28, [#allocation7], 512, 512, 32
    $region9: #{tpu_custom_call.1} parent=1 // pred_fallthru
      _
    // Predicated region
    $region10: #{tpu_custom_call.1} parent=1 // pred_check
      _
    $region11: #{tpu_custom_call.1} parent=1 // pred_check_branch
      %35 = sbr.rel (0) target = $region13
    $region12: #{tpu_custom_call.1} parent=1 // pred_region
      %36 = dma.done [#allocation4], 2048
    $region13: #{tpu_custom_call.1} parent=1 // pred_fallthru
      _
    // Predicated region
    $region14: #{tpu_custom_call.1} parent=1 // pred_check
      _
    $region15: #{tpu_custom_call.1} parent=1 // pred_check_branch
      %38 = sbr.rel (0) target = $region17
    $region16: #{tpu_custom_call.1} parent=1 // pred_region
      %39 = dma.done [#allocation7], 8192
    $region17: #{tpu_custom_call.1} parent=1 // pred_fallthru
      _
    %p40 = scmp.eq.s32.totalorder 0, 0
    // Predicated region
    $region18: #{tpu_custom_call.1} parent=1 // pred_check
      %p41 = pneg %p40
    $region19: #{tpu_custom_call.1} parent=1 // pred_check_branch
      %43 = sbr.rel (%p41) target = $region21
    $region20: #{tpu_custom_call.1} parent=1 // pred_region
      %44 = vst [vmem:[#allocation8] sm:$0xf] 0.0
      %45 = vst [vmem:[#allocation2] sm:$0xf] 0.0
    $region21: #{tpu_custom_call.1} parent=1 // pred_fallthru
      _
    %v46 = vld [vmem:[#allocation6] sm:$0xff]
    %v47 = vld [vmem:[#allocation6 + $0x8] sm:$0xff]
    %v48 = vld [vmem:[#allocation6 + $0x10] sm:$0xff]
    %v49 = vld [vmem:[#allocation6 + $0x18] sm:$0xff]
    %v50 = vld [vmem:[#allocation6 + $0x20] sm:$0xff]
    %v51 = vld [vmem:[#allocation6 + $0x28] sm:$0xff]
    %v52 = vld [vmem:[#allocation6 + $0x30] sm:$0xff]
    %v53 = vld [vmem:[#allocation6 + $0x38] sm:$0xff]
    %v54 = vld [vmem:[#allocation6 + $0x40] sm:$0xff]
    %v55 = vld [vmem:[#allocation6 + $0x48] sm:$0xff]
    %v56 = vld [vmem:[#allocation6 + $0x50] sm:$0xff]
    %v57 = vld [vmem:[#allocation6 + $0x58] sm:$0xff]
    %v58 = vld [vmem:[#allocation6 + $0x60] sm:$0xff]
    %v59 = vld [vmem:[#allocation6 + $0x68] sm:$0xff]
    %v60 = vld [vmem:[#allocation6 + $0x70] sm:$0xff]
    %v61 = vld [vmem:[#allocation6 + $0x78] sm:$0xff]
    %v62 = vld [vmem:[#allocation6 + $0x80] sm:$0xff]
    %v63 = vld [vmem:[#allocation6 + $0x88] sm:$0xff]
    %v64 = vld [vmem:[#allocation6 + $0x90] sm:$0xff]
    %v65 = vld [vmem:[#allocation6 + $0x98] sm:$0xff]
    %v66 = vld [vmem:[#allocation6 + $0xa0] sm:$0xff]
    %v67 = vld [vmem:[#allocation6 + $0xa8] sm:$0xff]
    %v68 = vld [vmem:[#allocation6 + $0xb0] sm:$0xff]
    %v69 = vld [vmem:[#allocation6 + $0xb8] sm:$0xff]
    %v70 = vld [vmem:[#allocation6 + $0xc0] sm:$0xff]
    %v71 = vld [vmem:[#allocation6 + $0xc8] sm:$0xff]
    %v72 = vld [vmem:[#allocation6 + $0xd0] sm:$0xff]
    %v73 = vld [vmem:[#allocation6 + $0xd8] sm:$0xff]
    %v74 = vld [vmem:[#allocation6 + $0xe0] sm:$0xff]
    %v75 = vld [vmem:[#allocation6 + $0xe8] sm:$0xff]
    %v76 = vld [vmem:[#allocation6 + $0xf0] sm:$0xff]
    %v77 = vld [vmem:[#allocation6 + $0xf8] sm:$0xff]
    %v78 = vld [vmem:[#allocation6 + $0x100] sm:$0xff]
    %v79 = vld [vmem:[#allocation6 + $0x108] sm:$0xff]
    %v80 = vld [vmem:[#allocation6 + $0x110] sm:$0xff]
    %v81 = vld [vmem:[#allocation6 + $0x118] sm:$0xff]
    %v82 = vld [vmem:[#allocation6 + $0x120] sm:$0xff]
    %v83 = vld [vmem:[#allocation6 + $0x128] sm:$0xff]
    %v84 = vld [vmem:[#allocation6 + $0x130] sm:$0xff]
    %v85 = vld [vmem:[#allocation6 + $0x138] sm:$0xff]
    %v86 = vld [vmem:[#allocation6 + $0x140] sm:$0xff]
    %v87 = vld [vmem:[#allocation6 + $0x148] sm:$0xff]
    %v88 = vld [vmem:[#allocation6 + $0x150] sm:$0xff]
    %v89 = vld [vmem:[#allocation6 + $0x158] sm:$0xff]
    %v90 = vld [vmem:[#allocation6 + $0x160] sm:$0xff]
    %v91 = vld [vmem:[#allocation6 + $0x168] sm:$0xff]
    %v92 = vld [vmem:[#allocation6 + $0x170] sm:$0xff]
    %v93 = vld [vmem:[#allocation6 + $0x178] sm:$0xff]
    %v94 = vld [vmem:[#allocation6 + $0x180] sm:$0xff]
    %v95 = vld [vmem:[#allocation6 + $0x188] sm:$0xff]
    %v96 = vld [vmem:[#allocation6 + $0x190] sm:$0xff]
    %v97 = vld [vmem:[#allocation6 + $0x198] sm:$0xff]
    %v98 = vld [vmem:[#allocation6 + $0x1a0] sm:$0xff]
    %v99 = vld [vmem:[#allocation6 + $0x1a8] sm:$0xff]
    %v100 = vld [vmem:[#allocation6 + $0x1b0] sm:$0xff]
    %v101 = vld [vmem:[#allocation6 + $0x1b8] sm:$0xff]
    %v102 = vld [vmem:[#allocation6 + $0x1c0] sm:$0xff]
    %v103 = vld [vmem:[#allocation6 + $0x1c8] sm:$0xff]
    %v104 = vld [vmem:[#allocation6 + $0x1d0] sm:$0xff]
    %v105 = vld [vmem:[#allocation6 + $0x1d8] sm:$0xff]
    %v106 = vld [vmem:[#allocation6 + $0x1e0] sm:$0xff]
    %v107 = vld [vmem:[#allocation6 + $0x1e8] sm:$0xff]
    %v108 = vld [vmem:[#allocation6 + $0x1f0] sm:$0xff]
    %v109 = vld [vmem:[#allocation6 + $0x1f8] sm:$0xff]
    %v110 = vld [vmem:[#allocation8] sm:$0xf]
    %v111 = vld [vmem:[#allocation2] sm:$0xf]
    %v112 = vld [vmem:[#allocation3] sm:$0xff]
    %v113 = vld [vmem:[#allocation3 + $0x8] sm:$0xff]
    %114 = vmatprep.subr.mxu0 %v47
    %115 = vmatpush1.msra.mxu0 %v46
    %116 = vmatprep.subr.mxu0 %v51
    %117 = vmatpush1.msra.mxu0 %v50
    %118 = vmatprep.subr.mxu0 %v55
    %119 = vmatpush1.msra.mxu0 %v54
    %120 = vmatprep.subr.mxu0 %v59
    %121 = vmatpush1.msra.mxu0 %v58
    %122 = vmatprep.subr.mxu0 %v63
    %123 = vmatpush1.msra.mxu0 %v62
    %124 = vmatprep.subr.mxu0 %v67
    %125 = vmatpush1.msra.mxu0 %v66
    %126 = vmatprep.subr.mxu0 %v71
    %127 = vmatpush1.msra.mxu0 %v70
    %128 = vmatprep.subr.mxu0 %v75
    %129 = vmatpush1.msra.mxu0 %v74
    %130 = vmatprep.subr.mxu0 %v79
    %131 = vmatpush1.msra.mxu0 %v78
    %132 = vmatprep.subr.mxu0 %v83
    %133 = vmatpush1.msra.mxu0 %v82
    %134 = vmatprep.subr.mxu0 %v87
    %135 = vmatpush1.msra.mxu0 %v86
    %136 = vmatprep.subr.mxu0 %v91
    %137 = vmatpush1.msra.mxu0 %v90
    %138 = vmatprep.subr.mxu0 %v95
    %139 = vmatpush1.msra.mxu0 %v94
    %140 = vmatprep.subr.mxu0 %v99
    %141 = vmatpush1.msra.mxu0 %v98
    %142 = vmatprep.subr.mxu0 %v103
    %143 = vmatpush1.msra.mxu0 %v102
    %144 = vmatprep.subr.mxu0 %v107
    %145 = vmatpush1.msra.mxu0 %v106
    %146 = vmatprep.subr.mxu0 0.0
    %147 = vmatpush1.msra.mxu0 0.0
    %148 = vmatprep.subr.mxu0 0.0
    %149 = vmatpush1.msra.mxu0 0.0
    %150 = vmatprep.subr.mxu0 0.0
    %151 = vmatpush1.msra.mxu0 0.0
    %152 = vmatprep.subr.mxu0 0.0
    %153 = vmatpush1.msra.mxu0 0.0
    %154 = vmatprep.subr.mxu0 0.0
    %155 = vmatpush1.msra.mxu0 0.0
    %156 = vmatprep.subr.mxu0 0.0
    %157 = vmatpush1.msra.mxu0 0.0
    %158 = vmatprep.subr.mxu0 0.0
    %159 = vmatpush1.msra.mxu0 0.0
    %160 = vmatprep.subr.mxu0 0.0
    %161 = vmatpush1.msra.mxu0 0.0
    %162 = vmatprep.subr.mxu0 0.0
    %163 = vmatpush1.msra.mxu0 0.0
    %164 = vmatprep.subr.mxu0 0.0
    %165 = vmatpush1.msra.mxu0 0.0
    %166 = vmatprep.subr.mxu0 0.0
    %167 = vmatpush1.msra.mxu0 0.0
    %168 = vmatprep.subr.mxu0 0.0
    %169 = vmatpush1.msra.mxu0 0.0
    %170 = vmatprep.subr.mxu0 0.0
    %171 = vmatpush1.msra.mxu0 0.0
    %172 = vmatprep.subr.mxu0 0.0
    %173 = vmatpush1.msra.mxu0 0.0
    %174 = vmatprep.subr.mxu0 0.0
    %175 = vmatpush1.msra.mxu0 0.0
    %176 = vmatprep.subr.mxu0 0.0
    %177 = vmatpush1.msra.mxu0 0.0
    %178 = vmatprep.mubr.f32.mxu0 0.0
    %179 = vmatmul.mubr.f32.gmra.mrb[0].mxu0 %v110
    %v180 = vpop.f32.mrb[0].mxu0
    %v181 = vadd.f32 0.0, %v180
    %v182 = vpop.f32.mrb[0].mxu0
    %v183 = vadd.f32 0.0, %v182
    %184 = vdwg.mxu0
    %185 = vmatprep.subr.mxu0 %v49
    %186 = vmatpush1.msra.mxu0 %v48
    %187 = vmatprep.subr.mxu0 %v53
    %188 = vmatpush1.msra.mxu0 %v52
    %189 = vmatprep.subr.mxu0 %v57
    %190 = vmatpush1.msra.mxu0 %v56
    %191 = vmatprep.subr.mxu0 %v61
    %192 = vmatpush1.msra.mxu0 %v60
    %193 = vmatprep.subr.mxu0 %v65
    %194 = vmatpush1.msra.mxu0 %v64
    %195 = vmatprep.subr.mxu0 %v69
    %196 = vmatpush1.msra.mxu0 %v68
    %197 = vmatprep.subr.mxu0 %v73
    %198 = vmatpush1.msra.mxu0 %v72
    %199 = vmatprep.subr.mxu0 %v77
    %200 = vmatpush1.msra.mxu0 %v76
    %201 = vmatprep.subr.mxu0 %v81
    %202 = vmatpush1.msra.mxu0 %v80
    %203 = vmatprep.subr.mxu0 %v85
    %204 = vmatpush1.msra.mxu0 %v84
    %205 = vmatprep.subr.mxu0 %v89
    %206 = vmatpush1.msra.mxu0 %v88
    %207 = vmatprep.subr.mxu0 %v93
    %208 = vmatpush1.msra.mxu0 %v92
    %209 = vmatprep.subr.mxu0 %v97
    %210 = vmatpush1.msra.mxu0 %v96
    %211 = vmatprep.subr.mxu0 %v101
    %212 = vmatpush1.msra.mxu0 %v100
    %213 = vmatprep.subr.mxu0 %v105
    %214 = vmatpush1.msra.mxu0 %v104
    %215 = vmatprep.subr.mxu0 %v109
    %216 = vmatpush1.msra.mxu0 %v108
    %217 = vmatprep.subr.mxu0 0.0
    %218 = vmatpush1.msra.mxu0 0.0
    %219 = vmatprep.subr.mxu0 0.0
    %220 = vmatpush1.msra.mxu0 0.0
    %221 = vmatprep.subr.mxu0 0.0
    %222 = vmatpush1.msra.mxu0 0.0
    %223 = vmatprep.subr.mxu0 0.0
    %224 = vmatpush1.msra.mxu0 0.0
    %225 = vmatprep.subr.mxu0 0.0
    %226 = vmatpush1.msra.mxu0 0.0
    %227 = vmatprep.subr.mxu0 0.0
    %228 = vmatpush1.msra.mxu0 0.0
    %229 = vmatprep.subr.mxu0 0.0
    %230 = vmatpush1.msra.mxu0 0.0
    %231 = vmatprep.subr.mxu0 0.0
    %232 = vmatpush1.msra.mxu0 0.0
    %233 = vmatprep.subr.mxu0 0.0
    %234 = vmatpush1.msra.mxu0 0.0
    %235 = vmatprep.subr.mxu0 0.0
    %236 = vmatpush1.msra.mxu0 0.0
    %237 = vmatprep.subr.mxu0 0.0
    %238 = vmatpush1.msra.mxu0 0.0
    %239 = vmatprep.subr.mxu0 0.0
    %240 = vmatpush1.msra.mxu0 0.0
    %241 = vmatprep.subr.mxu0 0.0
    %242 = vmatpush1.msra.mxu0 0.0
    %243 = vmatprep.subr.mxu0 0.0
    %244 = vmatpush1.msra.mxu0 0.0
    %245 = vmatprep.subr.mxu0 0.0
    %246 = vmatpush1.msra.mxu0 0.0
    %247 = vmatprep.subr.mxu0 0.0
    %248 = vmatpush1.msra.mxu0 0.0
    %249 = vmatprep.mubr.f32.mxu0 0.0
    %250 = vmatmul.mubr.f32.gmra.mrb[0].mxu0 %v110
    %v251 = vpop.f32.mrb[0].mxu0
    %v252 = vadd.f32 0.0, %v251
    %v253 = vpop.f32.mrb[0].mxu0
    %v254 = vadd.f32 0.0, %v253
    %255 = vdwg.mxu0
    %v260 = vcombine.low %v181, %v183
    %v261 = vcombine.low %v252, %v254
    %v264 = vadd.f32 %v112, %v260
    %v265 = vadd.f32 %v113, %v261
    %v266 = vxor.u32 %v264, 2147483648
    %v267 = vmul.f32 %v266, 1.442695
    %v268 = vpow.pop %v267
    %v269 = vadd.f32 %v268, 1.0
    %v270 = vrcp.pop %v269
    %v271 = vmul.f32 1.0, %v270
    %v273 = vrot.slane %v264, 4
    %v275 = vxor.u32 %v273, 2147483648
    %v276 = vmul.f32 %v275, 1.442695
    %v277 = vpow.pop %v276
    %v278 = vadd.f32 %v277, 1.0
    %v279 = vrcp.pop %v278
    %v280 = vmul.f32 1.0, %v279
    %v281 = vtanh.pop %v265
    %v283 = vrot.slane %v265, 4
    %v285 = vxor.u32 %v283, 2147483648
    %v286 = vmul.f32 %v285, 1.442695
    %v287 = vpow.pop %v286
    %v288 = vadd.f32 %v287, 1.0
    %v289 = vrcp.pop %v288
    %v290 = vmul.f32 1.0, %v289
    %v291 = vmul.f32 %v280, %v111
    %v292 = vmul.f32 %v271, %v281
    %v293 = vadd.f32 %v291, %v292
    %v294 = vtanh.pop %v293
    %v295 = vmul.f32 %v290, %v294
    %s296 = scalar_lea.vmem [#allocation3], 16
    %v297 = vld [vmem:[%s296] sm:$0xff]
    %v298 = vld [vmem:[%s296 + $0x8] sm:$0xff]
    %299 = vmatprep.subr.mxu0 %v47
    %300 = vmatpush1.msra.mxu0 %v46
    %301 = vmatprep.subr.mxu0 %v51
    %302 = vmatpush1.msra.mxu0 %v50
    %303 = vmatprep.subr.mxu0 %v55
    %304 = vmatpush1.msra.mxu0 %v54
    %305 = vmatprep.subr.mxu0 %v59
    %306 = vmatpush1.msra.mxu0 %v58
    %307 = vmatprep.subr.mxu0 %v63
    %308 = vmatpush1.msra.mxu0 %v62
    %309 = vmatprep.subr.mxu0 %v67
    %310 = vmatpush1.msra.mxu0 %v66
    %311 = vmatprep.subr.mxu0 %v71
    %312 = vmatpush1.msra.mxu0 %v70
    %313 = vmatprep.subr.mxu0 %v75
    %314 = vmatpush1.msra.mxu0 %v74
    %315 = vmatprep.subr.mxu0 %v79
    %316 = vmatpush1.msra.mxu0 %v78
    %317 = vmatprep.subr.mxu0 %v83
    %318 = vmatpush1.msra.mxu0 %v82
    %319 = vmatprep.subr.mxu0 %v87
    %320 = vmatpush1.msra.mxu0 %v86
    %321 = vmatprep.subr.mxu0 %v91
    %322 = vmatpush1.msra.mxu0 %v90
    %323 = vmatprep.subr.mxu0 %v95
    %324 = vmatpush1.msra.mxu0 %v94
    %325 = vmatprep.subr.mxu0 %v99
    %326 = vmatpush1.msra.mxu0 %v98
    %327 = vmatprep.subr.mxu0 %v103
    %328 = vmatpush1.msra.mxu0 %v102
    %329 = vmatprep.subr.mxu0 %v107
    %330 = vmatpush1.msra.mxu0 %v106
    %331 = vmatprep.subr.mxu0 0.0
    %332 = vmatpush1.msra.mxu0 0.0
    %333 = vmatprep.subr.mxu0 0.0
    %334 = vmatpush1.msra.mxu0 0.0
    %335 = vmatprep.subr.mxu0 0.0
    %336 = vmatpush1.msra.mxu0 0.0
    %337 = vmatprep.subr.mxu0 0.0
    %338 = vmatpush1.msra.mxu0 0.0
    %339 = vmatprep.subr.mxu0 0.0
    %340 = vmatpush1.msra.mxu0 0.0
    %341 = vmatprep.subr.mxu0 0.0
    %342 = vmatpush1.msra.mxu0 0.0
    %343 = vmatprep.subr.mxu0 0.0
    %344 = vmatpush1.msra.mxu0 0.0
    %345 = vmatprep.subr.mxu0 0.0
    %346 = vmatpush1.msra.mxu0 0.0
    %347 = vmatprep.subr.mxu0 0.0
    %348 = vmatpush1.msra.mxu0 0.0
    %349 = vmatprep.subr.mxu0 0.0
    %350 = vmatpush1.msra.mxu0 0.0
    %351 = vmatprep.subr.mxu0 0.0
    %352 = vmatpush1.msra.mxu0 0.0
    %353 = vmatprep.subr.mxu0 0.0
    %354 = vmatpush1.msra.mxu0 0.0
    %355 = vmatprep.subr.mxu0 0.0
    %356 = vmatpush1.msra.mxu0 0.0
    %357 = vmatprep.subr.mxu0 0.0
    %358 = vmatpush1.msra.mxu0 0.0
    %359 = vmatprep.subr.mxu0 0.0
    %360 = vmatpush1.msra.mxu0 0.0
    %361 = vmatprep.subr.mxu0 0.0
    %362 = vmatpush1.msra.mxu0 0.0
    %363 = vmatprep.mubr.f32.mxu0 0.0
    %364 = vmatmul.mubr.f32.gmra.mrb[0].mxu0 %v295
    %v365 = vpop.f32.mrb[0].mxu0
    %v366 = vadd.f32 0.0, %v365
    %v367 = vpop.f32.mrb[0].mxu0
    %v368 = vadd.f32 0.0, %v367
    %369 = vdwg.mxu0
    %370 = vmatprep.subr.mxu0 %v49
    %371 = vmatpush1.msra.mxu0 %v48
    %372 = vmatprep.subr.mxu0 %v53
    %373 = vmatpush1.msra.mxu0 %v52
    %374 = vmatprep.subr.mxu0 %v57
    %375 = vmatpush1.msra.mxu0 %v56
    %376 = vmatprep.subr.mxu0 %v61
    %377 = vmatpush1.msra.mxu0 %v60
    %378 = vmatprep.subr.mxu0 %v65
    %379 = vmatpush1.msra.mxu0 %v64
    %380 = vmatprep.subr.mxu0 %v69
    %381 = vmatpush1.msra.mxu0 %v68
    %382 = vmatprep.subr.mxu0 %v73
    %383 = vmatpush1.msra.mxu0 %v72
    %384 = vmatprep.subr.mxu0 %v77
    %385 = vmatpush1.msra.mxu0 %v76
    %386 = vmatprep.subr.mxu0 %v81
    %387 = vmatpush1.msra.mxu0 %v80
    %388 = vmatprep.subr.mxu0 %v85
    %389 = vmatpush1.msra.mxu0 %v84
    %390 = vmatprep.subr.mxu0 %v89
    %391 = vmatpush1.msra.mxu0 %v88
    %392 = vmatprep.subr.mxu0 %v93
    %393 = vmatpush1.msra.mxu0 %v92
    %394 = vmatprep.subr.mxu0 %v97
    %395 = vmatpush1.msra.mxu0 %v96
    %396 = vmatprep.subr.mxu0 %v101
    %397 = vmatpush1.msra.mxu0 %v100
    %398 = vmatprep.subr.mxu0 %v105
    %399 = vmatpush1.msra.mxu0 %v104
    %400 = vmatprep.subr.mxu0 %v109
    %401 = vmatpush1.msra.mxu0 %v108
    %402 = vmatprep.subr.mxu0 0.0
    %403 = vmatpush1.msra.mxu0 0.0
    %404 = vmatprep.subr.mxu0 0.0
    %405 = vmatpush1.msra.mxu0 0.0
    %406 = vmatprep.subr.mxu0 0.0
    %407 = vmatpush1.msra.mxu0 0.0
    %408 = vmatprep.subr.mxu0 0.0
    %409 = vmatpush1.msra.mxu0 0.0
    %410 = vmatprep.subr.mxu0 0.0
    %411 = vmatpush1.msra.mxu0 0.0
    %412 = vmatprep.subr.mxu0 0.0
    %413 = vmatpush1.msra.mxu0 0.0
    %414 = vmatprep.subr.mxu0 0.0
    %415 = vmatpush1.msra.mxu0 0.0
    %416 = vmatprep.subr.mxu0 0.0
    %417 = vmatpush1.msra.mxu0 0.0
    %418 = vmatprep.subr.mxu0 0.0
    %419 = vmatpush1.msra.mxu0 0.0
    %420 = vmatprep.subr.mxu0 0.0
    %421 = vmatpush1.msra.mxu0 0.0
    %422 = vmatprep.subr.mxu0 0.0
    %423 = vmatpush1.msra.mxu0 0.0
    %424 = vmatprep.subr.mxu0 0.0
    %425 = vmatpush1.msra.mxu0 0.0
    %426 = vmatprep.subr.mxu0 0.0
    %427 = vmatpush1.msra.mxu0 0.0
    %428 = vmatprep.subr.mxu0 0.0
    %429 = vmatpush1.msra.mxu0 0.0
    %430 = vmatprep.subr.mxu0 0.0
    %431 = vmatpush1.msra.mxu0 0.0
    %432 = vmatprep.subr.mxu0 0.0
    %433 = vmatpush1.msra.mxu0 0.0
    %434 = vmatprep.mubr.f32.mxu0 0.0
    %435 = vmatmul.mubr.f32.gmra.mrb[0].mxu0 %v295
    %v436 = vpop.f32.mrb[0].mxu0
    %v437 = vadd.f32 0.0, %v436
    %v438 = vpop.f32.mrb[0].mxu0
    %v439 = vadd.f32 0.0, %v438
    %440 = vdwg.mxu0
    %v445 = vcombine.low %v366, %v368
    %v446 = vcombine.low %v437, %v439
    %v449 = vadd.f32 %v297, %v445
    %v450 = vadd.f32 %v298, %v446
    %v451 = vxor.u32 %v449, 2147483648
    %v452 = vmul.f32 %v451, 1.442695
    %v453 = vpow.pop %v452
    %v454 = vadd.f32 %v453, 1.0
    %v455 = vrcp.pop %v454
    %v456 = vmul.f32 1.0, %v455
    %v458 = vrot.slane %v449, 4
    %v460 = vxor.u32 %v458, 2147483648
    %v461 = vmul.f32 %v460, 1.442695
    %v462 = vpow.pop %v461
    %v463 = vadd.f32 %v462, 1.0
    %v464 = vrcp.pop %v463
    %v465 = vmul.f32 1.0, %v464
    %v466 = vtanh.pop %v450
    %v468 = vrot.slane %v450, 4
    %v470 = vxor.u32 %v468, 2147483648
    %v471 = vmul.f32 %v470, 1.442695
    %v472 = vpow.pop %v471
    %v473 = vadd.f32 %v472, 1.0
    %v474 = vrcp.pop %v473
    %v475 = vmul.f32 1.0, %v474
    %v476 = vmul.f32 %v465, %v293
    %v477 = vmul.f32 %v456, %v466
    %v478 = vadd.f32 %v476, %v477
    %v479 = vtanh.pop %v478
    %v480 = vmul.f32 %v475, %v479
    %s481 = scalar_lea.vmem [#allocation3], 32
    %v482 = vld [vmem:[%s481] sm:$0xff]
    %v483 = vld [vmem:[%s481 + $0x8] sm:$0xff]
    %484 = vmatprep.subr.mxu0 %v47
    %485 = vmatpush1.msra.mxu0 %v46
    %486 = vmatprep.subr.mxu0 %v51
    %487 = vmatpush1.msra.mxu0 %v50
    %488 = vmatprep.subr.mxu0 %v55
    %489 = vmatpush1.msra.mxu0 %v54
    %490 = vmatprep.subr.mxu0 %v59
    %491 = vmatpush1.msra.mxu0 %v58
    %492 = vmatprep.subr.mxu0 %v63
    %493 = vmatpush1.msra.mxu0 %v62
    %494 = vmatprep.subr.mxu0 %v67
    %495 = vmatpush1.msra.mxu0 %v66
    %496 = vmatprep.subr.mxu0 %v71
    %497 = vmatpush1.msra.mxu0 %v70
    %498 = vmatprep.subr.mxu0 %v75
    %499 = vmatpush1.msra.mxu0 %v74
    %500 = vmatprep.subr.mxu0 %v79
    %501 = vmatpush1.msra.mxu0 %v78
    %502 = vmatprep.subr.mxu0 %v83
    %503 = vmatpush1.msra.mxu0 %v82
    %504 = vmatprep.subr.mxu0 %v87
    %505 = vmatpush1.msra.mxu0 %v86
    %506 = vmatprep.subr.mxu0 %v91
    %507 = vmatpush1.msra.mxu0 %v90
    %508 = vmatprep.subr.mxu0 %v95
    %509 = vmatpush1.msra.mxu0 %v94
    %510 = vmatprep.subr.mxu0 %v99
    %511 = vmatpush1.msra.mxu0 %v98
    %512 = vmatprep.subr.mxu0 %v103
    %513 = vmatpush1.msra.mxu0 %v102
    %514 = vmatprep.subr.mxu0 %v107
    %515 = vmatpush1.msra.mxu0 %v106
    %516 = vmatprep.subr.mxu0 0.0
    %517 = vmatpush1.msra.mxu0 0.0
    %518 = vmatprep.subr.mxu0 0.0
    %519 = vmatpush1.msra.mxu0 0.0
    %520 = vmatprep.subr.mxu0 0.0
    %521 = vmatpush1.msra.mxu0 0.0
    %522 = vmatprep.subr.mxu0 0.0
    %523 = vmatpush1.msra.mxu0 0.0
    %524 = vmatprep.subr.mxu0 0.0
    %525 = vmatpush1.msra.mxu0 0.0
    %526 = vmatprep.subr.mxu0 0.0
    %527 = vmatpush1.msra.mxu0 0.0
    %528 = vmatprep.subr.mxu0 0.0
    %529 = vmatpush1.msra.mxu0 0.0
    %530 = vmatprep.subr.mxu0 0.0
    %531 = vmatpush1.msra.mxu0 0.0
    %532 = vmatprep.subr.mxu0 0.0
    %533 = vmatpush1.msra.mxu0 0.0
    %534 = vmatprep.subr.mxu0 0.0
    %535 = vmatpush1.msra.mxu0 0.0
    %536 = vmatprep.subr.mxu0 0.0
    %537 = vmatpush1.msra.mxu0 0.0
    %538 = vmatprep.subr.mxu0 0.0
    %539 = vmatpush1.msra.mxu0 0.0
    %540 = vmatprep.subr.mxu0 0.0
    %541 = vmatpush1.msra.mxu0 0.0
    %542 = vmatprep.subr.mxu0 0.0
    %543 = vmatpush1.msra.mxu0 0.0
    %544 = vmatprep.subr.mxu0 0.0
    %545 = vmatpush1.msra.mxu0 0.0
    %546 = vmatprep.subr.mxu0 0.0
    %547 = vmatpush1.msra.mxu0 0.0
    %548 = vmatprep.mubr.f32.mxu0 0.0
    %549 = vmatmul.mubr.f32.gmra.mrb[0].mxu0 %v480
    %v550 = vpop.f32.mrb[0].mxu0
    %v551 = vadd.f32 0.0, %v550
    %v552 = vpop.f32.mrb[0].mxu0
    %v553 = vadd.f32 0.0, %v552
    %554 = vdwg.mxu0
    %555 = vmatprep.subr.mxu0 %v49
    %556 = vmatpush1.msra.mxu0 %v48
    %557 = vmatprep.subr.mxu0 %v53
    %558 = vmatpush1.msra.mxu0 %v52
    %559 = vmatprep.subr.mxu0 %v57
    %560 = vmatpush1.msra.mxu0 %v56
    %561 = vmatprep.subr.mxu0 %v61
    %562 = vmatpush1.msra.mxu0 %v60
    %563 = vmatprep.subr.mxu0 %v65
    %564 = vmatpush1.msra.mxu0 %v64
    %565 = vmatprep.subr.mxu0 %v69
    %566 = vmatpush1.msra.mxu0 %v68
    %567 = vmatprep.subr.mxu0 %v73
    %568 = vmatpush1.msra.mxu0 %v72
    %569 = vmatprep.subr.mxu0 %v77
    %570 = vmatpush1.msra.mxu0 %v76
    %571 = vmatprep.subr.mxu0 %v81
    %572 = vmatpush1.msra.mxu0 %v80
    %573 = vmatprep.subr.mxu0 %v85
    %574 = vmatpush1.msra.mxu0 %v84
    %575 = vmatprep.subr.mxu0 %v89
    %576 = vmatpush1.msra.mxu0 %v88
    %577 = vmatprep.subr.mxu0 %v93
    %578 = vmatpush1.msra.mxu0 %v92
    %579 = vmatprep.subr.mxu0 %v97
    %580 = vmatpush1.msra.mxu0 %v96
    %581 = vmatprep.subr.mxu0 %v101
    %582 = vmatpush1.msra.mxu0 %v100
    %583 = vmatprep.subr.mxu0 %v105
    %584 = vmatpush1.msra.mxu0 %v104
    %585 = vmatprep.subr.mxu0 %v109
    %586 = vmatpush1.msra.mxu0 %v108
    %587 = vmatprep.subr.mxu0 0.0
    %588 = vmatpush1.msra.mxu0 0.0
    %589 = vmatprep.subr.mxu0 0.0
    %590 = vmatpush1.msra.mxu0 0.0
    %591 = vmatprep.subr.mxu0 0.0
    %592 = vmatpush1.msra.mxu0 0.0
    %593 = vmatprep.subr.mxu0 0.0
    %594 = vmatpush1.msra.mxu0 0.0
    %595 = vmatprep.subr.mxu0 0.0
    %596 = vmatpush1.msra.mxu0 0.0
    %597 = vmatprep.subr.mxu0 0.0
    %598 = vmatpush1.msra.mxu0 0.0
    %599 = vmatprep.subr.mxu0 0.0
    %600 = vmatpush1.msra.mxu0 0.0
    %601 = vmatprep.subr.mxu0 0.0
    %602 = vmatpush1.msra.mxu0 0.0
    %603 = vmatprep.subr.mxu0 0.0
    %604 = vmatpush1.msra.mxu0 0.0
    %605 = vmatprep.subr.mxu0 0.0
    %606 = vmatpush1.msra.mxu0 0.0
    %607 = vmatprep.subr.mxu0 0.0
    %608 = vmatpush1.msra.mxu0 0.0
    %609 = vmatprep.subr.mxu0 0.0
    %610 = vmatpush1.msra.mxu0 0.0
    %611 = vmatprep.subr.mxu0 0.0
    %612 = vmatpush1.msra.mxu0 0.0
    %613 = vmatprep.subr.mxu0 0.0
    %614 = vmatpush1.msra.mxu0 0.0
    %615 = vmatprep.subr.mxu0 0.0
    %616 = vmatpush1.msra.mxu0 0.0
    %617 = vmatprep.subr.mxu0 0.0
    %618 = vmatpush1.msra.mxu0 0.0
    %619 = vmatprep.mubr.f32.mxu0 0.0
    %620 = vmatmul.mubr.f32.gmra.mrb[0].mxu0 %v480
    %v621 = vpop.f32.mrb[0].mxu0
    %v622 = vadd.f32 0.0, %v621
    %v623 = vpop.f32.mrb[0].mxu0
    %v624 = vadd.f32 0.0, %v623
    %625 = vdwg.mxu0
    %v630 = vcombine.low %v551, %v553
    %v631 = vcombine.low %v622, %v624
    %v634 = vadd.f32 %v482, %v630
    %v635 = vadd.f32 %v483, %v631
    %v636 = vxor.u32 %v634, 2147483648
    %v637 = vmul.f32 %v636, 1.442695
    %v638 = vpow.pop %v637
    %v639 = vadd.f32 %v638, 1.0
    %v640 = vrcp.pop %v639
    %v641 = vmul.f32 1.0, %v640
    %v643 = vrot.slane %v634, 4
    %v645 = vxor.u32 %v643, 2147483648
    %v646 = vmul.f32 %v645, 1.442695
    %v647 = vpow.pop %v646
    %v648 = vadd.f32 %v647, 1.0
    %v649 = vrcp.pop %v648
    %v650 = vmul.f32 1.0, %v649
    %v651 = vtanh.pop %v635
    %v653 = vrot.slane %v635, 4
    %v655 = vxor.u32 %v653, 2147483648
    %v656 = vmul.f32 %v655, 1.442695
    %v657 = vpow.pop %v656
    %v658 = vadd.f32 %v657, 1.0
    %v659 = vrcp.pop %v658
    %v660 = vmul.f32 1.0, %v659
    %v661 = vmul.f32 %v650, %v478
    %v662 = vmul.f32 %v641, %v651
    %v663 = vadd.f32 %v661, %v662
    %v664 = vtanh.pop %v663
    %v665 = vmul.f32 %v660, %v664
    %s666 = scalar_lea.vmem [#allocation3], 48
    %v667 = vld [vmem:[%s666] sm:$0xff]
    %v668 = vld [vmem:[%s666 + $0x8] sm:$0xff]
    %669 = vmatprep.subr.mxu0 %v47
    %670 = vmatpush1.msra.mxu0 %v46
    %671 = vmatprep.subr.mxu0 %v51
    %672 = vmatpush1.msra.mxu0 %v50
    %673 = vmatprep.subr.mxu0 %v55
    %674 = vmatpush1.msra.mxu0 %v54
    %675 = vmatprep.subr.mxu0 %v59
    %676 = vmatpush1.msra.mxu0 %v58
    %677 = vmatprep.subr.mxu0 %v63
    %678 = vmatpush1.msra.mxu0 %v62
    %679 = vmatprep.subr.mxu0 %v67
    %680 = vmatpush1.msra.mxu0 %v66
    %681 = vmatprep.subr.mxu0 %v71
    %682 = vmatpush1.msra.mxu0 %v70
    %683 = vmatprep.subr.mxu0 %v75
    %684 = vmatpush1.msra.mxu0 %v74
    %685 = vmatprep.subr.mxu0 %v79
    %686 = vmatpush1.msra.mxu0 %v78
    %687 = vmatprep.subr.mxu0 %v83
    %688 = vmatpush1.msra.mxu0 %v82
    %689 = vmatprep.subr.mxu0 %v87
    %690 = vmatpush1.msra.mxu0 %v86
    %691 = vmatprep.subr.mxu0 %v91
    %692 = vmatpush1.msra.mxu0 %v90
    %693 = vmatprep.subr.mxu0 %v95
    %694 = vmatpush1.msra.mxu0 %v94
    %695 = vmatprep.subr.mxu0 %v99
    %696 = vmatpush1.msra.mxu0 %v98
    %697 = vmatprep.subr.mxu0 %v103
    %698 = vmatpush1.msra.mxu0 %v102
    %699 = vmatprep.subr.mxu0 %v107
    %700 = vmatpush1.msra.mxu0 %v106
    %701 = vmatprep.subr.mxu0 0.0
    %702 = vmatpush1.msra.mxu0 0.0
    %703 = vmatprep.subr.mxu0 0.0
    %704 = vmatpush1.msra.mxu0 0.0
    %705 = vmatprep.subr.mxu0 0.0
    %706 = vmatpush1.msra.mxu0 0.0
    %707 = vmatprep.subr.mxu0 0.0
    %708 = vmatpush1.msra.mxu0 0.0
    %709 = vmatprep.subr.mxu0 0.0
    %710 = vmatpush1.msra.mxu0 0.0
    %711 = vmatprep.subr.mxu0 0.0
    %712 = vmatpush1.msra.mxu0 0.0
    %713 = vmatprep.subr.mxu0 0.0
    %714 = vmatpush1.msra.mxu0 0.0
    %715 = vmatprep.subr.mxu0 0.0
    %716 = vmatpush1.msra.mxu0 0.0
    %717 = vmatprep.subr.mxu0 0.0
    %718 = vmatpush1.msra.mxu0 0.0
    %719 = vmatprep.subr.mxu0 0.0
    %720 = vmatpush1.msra.mxu0 0.0
    %721 = vmatprep.subr.mxu0 0.0
    %722 = vmatpush1.msra.mxu0 0.0
    %723 = vmatprep.subr.mxu0 0.0
    %724 = vmatpush1.msra.mxu0 0.0
    %725 = vmatprep.subr.mxu0 0.0
    %726 = vmatpush1.msra.mxu0 0.0
    %727 = vmatprep.subr.mxu0 0.0
    %728 = vmatpush1.msra.mxu0 0.0
    %729 = vmatprep.subr.mxu0 0.0
    %730 = vmatpush1.msra.mxu0 0.0
    %731 = vmatprep.subr.mxu0 0.0
    %732 = vmatpush1.msra.mxu0 0.0
    %733 = vmatprep.mubr.f32.mxu0 0.0
    %734 = vmatmul.mubr.f32.gmra.mrb[0].mxu0 %v665
    %v735 = vpop.f32.mrb[0].mxu0
    %v736 = vadd.f32 0.0, %v735
    %v737 = vpop.f32.mrb[0].mxu0
    %v738 = vadd.f32 0.0, %v737
    %739 = vdwg.mxu0
    %740 = vmatprep.subr.mxu0 %v49
    %741 = vmatpush1.msra.mxu0 %v48
    %742 = vmatprep.subr.mxu0 %v53
    %743 = vmatpush1.msra.mxu0 %v52
    %744 = vmatprep.subr.mxu0 %v57
    %745 = vmatpush1.msra.mxu0 %v56
    %746 = vmatprep.subr.mxu0 %v61
    %747 = vmatpush1.msra.mxu0 %v60
    %748 = vmatprep.subr.mxu0 %v65
    %749 = vmatpush1.msra.mxu0 %v64
    %750 = vmatprep.subr.mxu0 %v69
    %751 = vmatpush1.msra.mxu0 %v68
    %752 = vmatprep.subr.mxu0 %v73
    %753 = vmatpush1.msra.mxu0 %v72
    %754 = vmatprep.subr.mxu0 %v77
    %755 = vmatpush1.msra.mxu0 %v76
    %756 = vmatprep.subr.mxu0 %v81
    %757 = vmatpush1.msra.mxu0 %v80
    %758 = vmatprep.subr.mxu0 %v85
    %759 = vmatpush1.msra.mxu0 %v84
    %760 = vmatprep.subr.mxu0 %v89
    %761 = vmatpush1.msra.mxu0 %v88
    %762 = vmatprep.subr.mxu0 %v93
    %763 = vmatpush1.msra.mxu0 %v92
    %764 = vmatprep.subr.mxu0 %v97
    %765 = vmatpush1.msra.mxu0 %v96
    %766 = vmatprep.subr.mxu0 %v101
    %767 = vmatpush1.msra.mxu0 %v100
    %768 = vmatprep.subr.mxu0 %v105
    %769 = vmatpush1.msra.mxu0 %v104
    %770 = vmatprep.subr.mxu0 %v109
    %771 = vmatpush1.msra.mxu0 %v108
    %772 = vmatprep.subr.mxu0 0.0
    %773 = vmatpush1.msra.mxu0 0.0
    %774 = vmatprep.subr.mxu0 0.0
    %775 = vmatpush1.msra.mxu0 0.0
    %776 = vmatprep.subr.mxu0 0.0
    %777 = vmatpush1.msra.mxu0 0.0
    %778 = vmatprep.subr.mxu0 0.0
    %779 = vmatpush1.msra.mxu0 0.0
    %780 = vmatprep.subr.mxu0 0.0
    %781 = vmatpush1.msra.mxu0 0.0
    %782 = vmatprep.subr.mxu0 0.0
    %783 = vmatpush1.msra.mxu0 0.0
    %784 = vmatprep.subr.mxu0 0.0
    %785 = vmatpush1.msra.mxu0 0.0
    %786 = vmatprep.subr.mxu0 0.0
    %787 = vmatpush1.msra.mxu0 0.0
    %788 = vmatprep.subr.mxu0 0.0
    %789 = vmatpush1.msra.mxu0 0.0
    %790 = vmatprep.subr.mxu0 0.0
    %791 = vmatpush1.msra.mxu0 0.0
    %792 = vmatprep.subr.mxu0 0.0
    %793 = vmatpush1.msra.mxu0 0.0
    %794 = vmatprep.subr.mxu0 0.0
    %795 = vmatpush1.msra.mxu0 0.0
    %796 = vmatprep.subr.mxu0 0.0
    %797 = vmatpush1.msra.mxu0 0.0
    %798 = vmatprep.subr.mxu0 0.0
    %799 = vmatpush1.msra.mxu0 0.0
    %800 = vmatprep.subr.mxu0 0.0
    %801 = vmatpush1.msra.mxu0 0.0
    %802 = vmatprep.subr.mxu0 0.0
    %803 = vmatpush1.msra.mxu0 0.0
    %804 = vmatprep.mubr.f32.mxu0 0.0
    %805 = vmatmul.mubr.f32.gmra.mrb[0].mxu0 %v665
    %v806 = vpop.f32.mrb[0].mxu0
    %v807 = vadd.f32 0.0, %v806
    %v808 = vpop.f32.mrb[0].mxu0
    %v809 = vadd.f32 0.0, %v808
    %810 = vdwg.mxu0
    %v815 = vcombine.low %v736, %v738
    %v816 = vcombine.low %v807, %v809
    %v819 = vadd.f32 %v667, %v815
    %v820 = vadd.f32 %v668, %v816
    %v821 = vxor.u32 %v819, 2147483648
    %v822 = vmul.f32 %v821, 1.442695
    %v823 = vpow.pop %v822
    %v824 = vadd.f32 %v823, 1.0
    %v825 = vrcp.pop %v824
    %v826 = vmul.f32 1.0, %v825
    %v828 = vrot.slane %v819, 4
    %v830 = vxor.u32 %v828, 2147483648
    %v831 = vmul.f32 %v830, 1.442695
    %v832 = vpow.pop %v831
    %v833 = vadd.f32 %v832, 1.0
    %v834 = vrcp.pop %v833
    %v835 = vmul.f32 1.0, %v834
    %v836 = vtanh.pop %v820
    %v838 = vrot.slane %v820, 4
    %v840 = vxor.u32 %v838, 2147483648
    %v841 = vmul.f32 %v840, 1.442695
    %v842 = vpow.pop %v841
    %v843 = vadd.f32 %v842, 1.0
    %v844 = vrcp.pop %v843
    %v845 = vmul.f32 1.0, %v844
    %v846 = vmul.f32 %v835, %v663
    %v847 = vmul.f32 %v826, %v836
    %v848 = vadd.f32 %v846, %v847
    %v849 = vtanh.pop %v848
    %v850 = vmul.f32 %v845, %v849
    %s851 = scalar_lea.vmem [#allocation3], 64
    %v852 = vld [vmem:[%s851] sm:$0xff]
    %v853 = vld [vmem:[%s851 + $0x8] sm:$0xff]
    %854 = vmatprep.subr.mxu0 %v47
    %855 = vmatpush1.msra.mxu0 %v46
    %856 = vmatprep.subr.mxu0 %v51
    %857 = vmatpush1.msra.mxu0 %v50
    %858 = vmatprep.subr.mxu0 %v55
    %859 = vmatpush1.msra.mxu0 %v54
    %860 = vmatprep.subr.mxu0 %v59
    %861 = vmatpush1.msra.mxu0 %v58
    %862 = vmatprep.subr.mxu0 %v63
    %863 = vmatpush1.msra.mxu0 %v62
    %864 = vmatprep.subr.mxu0 %v67
    %865 = vmatpush1.msra.mxu0 %v66
    %866 = vmatprep.subr.mxu0 %v71
    %867 = vmatpush1.msra.mxu0 %v70
    %868 = vmatprep.subr.mxu0 %v75
    %869 = vmatpush1.msra.mxu0 %v74
    %870 = vmatprep.subr.mxu0 %v79
    %871 = vmatpush1.msra.mxu0 %v78
    %872 = vmatprep.subr.mxu0 %v83
    %873 = vmatpush1.msra.mxu0 %v82
    %874 = vmatprep.subr.mxu0 %v87
    %875 = vmatpush1.msra.mxu0 %v86
    %876 = vmatprep.subr.mxu0 %v91
    %877 = vmatpush1.msra.mxu0 %v90
    %878 = vmatprep.subr.mxu0 %v95
    %879 = vmatpush1.msra.mxu0 %v94
    %880 = vmatprep.subr.mxu0 %v99
    %881 = vmatpush1.msra.mxu0 %v98
    %882 = vmatprep.subr.mxu0 %v103
    %883 = vmatpush1.msra.mxu0 %v102
    %884 = vmatprep.subr.mxu0 %v107
    %885 = vmatpush1.msra.mxu0 %v106
    %886 = vmatprep.subr.mxu0 0.0
    %887 = vmatpush1.msra.mxu0 0.0
    %888 = vmatprep.subr.mxu0 0.0
    %889 = vmatpush1.msra.mxu0 0.0
    %890 = vmatprep.subr.mxu0 0.0
    %891 = vmatpush1.msra.mxu0 0.0
    %892 = vmatprep.subr.mxu0 0.0
    %893 = vmatpush1.msra.mxu0 0.0
    %894 = vmatprep.subr.mxu0 0.0
    %895 = vmatpush1.msra.mxu0 0.0
    %896 = vmatprep.subr.mxu0 0.0
    %897 = vmatpush1.msra.mxu0 0.0
    %898 = vmatprep.subr.mxu0 0.0
    %899 = vmatpush1.msra.mxu0 0.0
    %900 = vmatprep.subr.mxu0 0.0
    %901 = vmatpush1.msra.mxu0 0.0
    %902 = vmatprep.subr.mxu0 0.0
    %903 = vmatpush1.msra.mxu0 0.0
    %904 = vmatprep.subr.mxu0 0.0
    %905 = vmatpush1.msra.mxu0 0.0
    %906 = vmatprep.subr.mxu0 0.0
    %907 = vmatpush1.msra.mxu0 0.0
    %908 = vmatprep.subr.mxu0 0.0
    %909 = vmatpush1.msra.mxu0 0.0
    %910 = vmatprep.subr.mxu0 0.0
    %911 = vmatpush1.msra.mxu0 0.0
    %912 = vmatprep.subr.mxu0 0.0
    %913 = vmatpush1.msra.mxu0 0.0
    %914 = vmatprep.subr.mxu0 0.0
    %915 = vmatpush1.msra.mxu0 0.0
    %916 = vmatprep.subr.mxu0 0.0
    %917 = vmatpush1.msra.mxu0 0.0
    %918 = vmatprep.mubr.f32.mxu0 0.0
    %919 = vmatmul.mubr.f32.gmra.mrb[0].mxu0 %v850
    %v920 = vpop.f32.mrb[0].mxu0
    %v921 = vadd.f32 0.0, %v920
    %v922 = vpop.f32.mrb[0].mxu0
    %v923 = vadd.f32 0.0, %v922
    %924 = vdwg.mxu0
    %925 = vmatprep.subr.mxu0 %v49
    %926 = vmatpush1.msra.mxu0 %v48
    %927 = vmatprep.subr.mxu0 %v53
    %928 = vmatpush1.msra.mxu0 %v52
    %929 = vmatprep.subr.mxu0 %v57
    %930 = vmatpush1.msra.mxu0 %v56
    %931 = vmatprep.subr.mxu0 %v61
    %932 = vmatpush1.msra.mxu0 %v60
    %933 = vmatprep.subr.mxu0 %v65
    %934 = vmatpush1.msra.mxu0 %v64
    %935 = vmatprep.subr.mxu0 %v69
    %936 = vmatpush1.msra.mxu0 %v68
    %937 = vmatprep.subr.mxu0 %v73
    %938 = vmatpush1.msra.mxu0 %v72
    %939 = vmatprep.subr.mxu0 %v77
    %940 = vmatpush1.msra.mxu0 %v76
    %941 = vmatprep.subr.mxu0 %v81
    %942 = vmatpush1.msra.mxu0 %v80
    %943 = vmatprep.subr.mxu0 %v85
    %944 = vmatpush1.msra.mxu0 %v84
    %945 = vmatprep.subr.mxu0 %v89
    %946 = vmatpush1.msra.mxu0 %v88
    %947 = vmatprep.subr.mxu0 %v93
    %948 = vmatpush1.msra.mxu0 %v92
    %949 = vmatprep.subr.mxu0 %v97
    %950 = vmatpush1.msra.mxu0 %v96
    %951 = vmatprep.subr.mxu0 %v101
    %952 = vmatpush1.msra.mxu0 %v100
    %953 = vmatprep.subr.mxu0 %v105
    %954 = vmatpush1.msra.mxu0 %v104
    %955 = vmatprep.subr.mxu0 %v109
    %956 = vmatpush1.msra.mxu0 %v108
    %957 = vmatprep.subr.mxu0 0.0
    %958 = vmatpush1.msra.mxu0 0.0
    %959 = vmatprep.subr.mxu0 0.0
    %960 = vmatpush1.msra.mxu0 0.0
    %961 = vmatprep.subr.mxu0 0.0
    %962 = vmatpush1.msra.mxu0 0.0
    %963 = vmatprep.subr.mxu0 0.0
    %964 = vmatpush1.msra.mxu0 0.0
    %965 = vmatprep.subr.mxu0 0.0
    %966 = vmatpush1.msra.mxu0 0.0
    %967 = vmatprep.subr.mxu0 0.0
    %968 = vmatpush1.msra.mxu0 0.0
    %969 = vmatprep.subr.mxu0 0.0
    %970 = vmatpush1.msra.mxu0 0.0
    %971 = vmatprep.subr.mxu0 0.0
    %972 = vmatpush1.msra.mxu0 0.0
    %973 = vmatprep.subr.mxu0 0.0
    %974 = vmatpush1.msra.mxu0 0.0
    %975 = vmatprep.subr.mxu0 0.0
    %976 = vmatpush1.msra.mxu0 0.0
    %977 = vmatprep.subr.mxu0 0.0
    %978 = vmatpush1.msra.mxu0 0.0
    %979 = vmatprep.subr.mxu0 0.0
    %980 = vmatpush1.msra.mxu0 0.0
    %981 = vmatprep.subr.mxu0 0.0
    %982 = vmatpush1.msra.mxu0 0.0
    %983 = vmatprep.subr.mxu0 0.0
    %984 = vmatpush1.msra.mxu0 0.0
    %985 = vmatprep.subr.mxu0 0.0
    %986 = vmatpush1.msra.mxu0 0.0
    %987 = vmatprep.subr.mxu0 0.0
    %988 = vmatpush1.msra.mxu0 0.0
    %989 = vmatprep.mubr.f32.mxu0 0.0
    %990 = vmatmul.mubr.f32.gmra.mrb[0].mxu0 %v850
    %v991 = vpop.f32.mrb[0].mxu0
    %v992 = vadd.f32 0.0, %v991
    %v993 = vpop.f32.mrb[0].mxu0
    %v994 = vadd.f32 0.0, %v993
    %995 = vdwg.mxu0
    %v1000 = vcombine.low %v921, %v923
    %v1001 = vcombine.low %v992, %v994
    %v1004 = vadd.f32 %v852, %v1000
    %v1005 = vadd.f32 %v853, %v1001
    %v1006 = vxor.u32 %v1004, 2147483648
    %v1007 = vmul.f32 %v1006, 1.442695
    %v1008 = vpow.pop %v1007
    %v1009 = vadd.f32 %v1008, 1.0
    %v1010 = vrcp.pop %v1009
    %v1011 = vmul.f32 1.0, %v1010
    %v1013 = vrot.slane %v1004, 4
    %v1015 = vxor.u32 %v1013, 2147483648
    %v1016 = vmul.f32 %v1015, 1.442695
    %v1017 = vpow.pop %v1016
    %v1018 = vadd.f32 %v1017, 1.0
    %v1019 = vrcp.pop %v1018
    %v1020 = vmul.f32 1.0, %v1019
    %v1021 = vtanh.pop %v1005
    %v1023 = vrot.slane %v1005, 4
    %v1025 = vxor.u32 %v1023, 2147483648
    %v1026 = vmul.f32 %v1025, 1.442695
    %v1027 = vpow.pop %v1026
    %v1028 = vadd.f32 %v1027, 1.0
    %v1029 = vrcp.pop %v1028
    %v1030 = vmul.f32 1.0, %v1029
    %v1031 = vmul.f32 %v1020, %v848
    %v1032 = vmul.f32 %v1011, %v1021
    %v1033 = vadd.f32 %v1031, %v1032
    %v1034 = vtanh.pop %v1033
    %v1035 = vmul.f32 %v1030, %v1034
    %s1036 = scalar_lea.vmem [#allocation3], 80
    %v1037 = vld [vmem:[%s1036] sm:$0xff]
    %v1038 = vld [vmem:[%s1036 + $0x8] sm:$0xff]
    %1039 = vmatprep.subr.mxu0 %v47
    %1040 = vmatpush1.msra.mxu0 %v46
    %1041 = vmatprep.subr.mxu0 %v51
    %1042 = vmatpush1.msra.mxu0 %v50
    %1043 = vmatprep.subr.mxu0 %v55
    %1044 = vmatpush1.msra.mxu0 %v54
    %1045 = vmatprep.subr.mxu0 %v59
    %1046 = vmatpush1.msra.mxu0 %v58
    %1047 = vmatprep.subr.mxu0 %v63
    %1048 = vmatpush1.msra.mxu0 %v62
    %1049 = vmatprep.subr.mxu0 %v67
    %1050 = vmatpush1.msra.mxu0 %v66
    %1051 = vmatprep.subr.mxu0 %v71
    %1052 = vmatpush1.msra.mxu0 %v70
    %1053 = vmatprep.subr.mxu0 %v75
    %1054 = vmatpush1.msra.mxu0 %v74
    %1055 = vmatprep.subr.mxu0 %v79
    %1056 = vmatpush1.msra.mxu0 %v78
    %1057 = vmatprep.subr.mxu0 %v83
    %1058 = vmatpush1.msra.mxu0 %v82
    %1059 = vmatprep.subr.mxu0 %v87
    %1060 = vmatpush1.msra.mxu0 %v86
    %1061 = vmatprep.subr.mxu0 %v91
    %1062 = vmatpush1.msra.mxu0 %v90
    %1063 = vmatprep.subr.mxu0 %v95
    %1064 = vmatpush1.msra.mxu0 %v94
    %1065 = vmatprep.subr.mxu0 %v99
    %1066 = vmatpush1.msra.mxu0 %v98
    %1067 = vmatprep.subr.mxu0 %v103
    %1068 = vmatpush1.msra.mxu0 %v102
    %1069 = vmatprep.subr.mxu0 %v107
    %1070 = vmatpush1.msra.mxu0 %v106
    %1071 = vmatprep.subr.mxu0 0.0
    %1072 = vmatpush1.msra.mxu0 0.0
    %1073 = vmatprep.subr.mxu0 0.0
    %1074 = vmatpush1.msra.mxu0 0.0
    %1075 = vmatprep.subr.mxu0 0.0
    %1076 = vmatpush1.msra.mxu0 0.0
    %1077 = vmatprep.subr.mxu0 0.0
    %1078 = vmatpush1.msra.mxu0 0.0
    %1079 = vmatprep.subr.mxu0 0.0
    %1080 = vmatpush1.msra.mxu0 0.0
    %1081 = vmatprep.subr.mxu0 0.0
    %1082 = vmatpush1.msra.mxu0 0.0
    %1083 = vmatprep.subr.mxu0 0.0
    %1084 = vmatpush1.msra.mxu0 0.0
    %1085 = vmatprep.subr.mxu0 0.0
    %1086 = vmatpush1.msra.mxu0 0.0
    %1087 = vmatprep.subr.mxu0 0.0
    %1088 = vmatpush1.msra.mxu0 0.0
    %1089 = vmatprep.subr.mxu0 0.0
    %1090 = vmatpush1.msra.mxu0 0.0
    %1091 = vmatprep.subr.mxu0 0.0
    %1092 = vmatpush1.msra.mxu0 0.0
    %1093 = vmatprep.subr.mxu0 0.0
    %1094 = vmatpush1.msra.mxu0 0.0
    %1095 = vmatprep.subr.mxu0 0.0
    %1096 = vmatpush1.msra.mxu0 0.0
    %1097 = vmatprep.subr.mxu0 0.0
    %1098 = vmatpush1.msra.mxu0 0.0
    %1099 = vmatprep.subr.mxu0 0.0
    %1100 = vmatpush1.msra.mxu0 0.0
    %1101 = vmatprep.subr.mxu0 0.0
    %1102 = vmatpush1.msra.mxu0 0.0
    %1103 = vmatprep.mubr.f32.mxu0 0.0
    %1104 = vmatmul.mubr.f32.gmra.mrb[0].mxu0 %v1035
    %v1105 = vpop.f32.mrb[0].mxu0
    %v1106 = vadd.f32 0.0, %v1105
    %v1107 = vpop.f32.mrb[0].mxu0
    %v1108 = vadd.f32 0.0, %v1107
    %1109 = vdwg.mxu0
    %1110 = vmatprep.subr.mxu0 %v49
    %1111 = vmatpush1.msra.mxu0 %v48
    %1112 = vmatprep.subr.mxu0 %v53
    %1113 = vmatpush1.msra.mxu0 %v52
    %1114 = vmatprep.subr.mxu0 %v57
    %1115 = vmatpush1.msra.mxu0 %v56
    %1116 = vmatprep.subr.mxu0 %v61
    %1117 = vmatpush1.msra.mxu0 %v60
    %1118 = vmatprep.subr.mxu0 %v65
    %1119 = vmatpush1.msra.mxu0 %v64
    %1120 = vmatprep.subr.mxu0 %v69
    %1121 = vmatpush1.msra.mxu0 %v68
    %1122 = vmatprep.subr.mxu0 %v73
    %1123 = vmatpush1.msra.mxu0 %v72
    %1124 = vmatprep.subr.mxu0 %v77
    %1125 = vmatpush1.msra.mxu0 %v76
    %1126 = vmatprep.subr.mxu0 %v81
    %1127 = vmatpush1.msra.mxu0 %v80
    %1128 = vmatprep.subr.mxu0 %v85
    %1129 = vmatpush1.msra.mxu0 %v84
    %1130 = vmatprep.subr.mxu0 %v89
    %1131 = vmatpush1.msra.mxu0 %v88
    %1132 = vmatprep.subr.mxu0 %v93
    %1133 = vmatpush1.msra.mxu0 %v92
    %1134 = vmatprep.subr.mxu0 %v97
    %1135 = vmatpush1.msra.mxu0 %v96
    %1136 = vmatprep.subr.mxu0 %v101
    %1137 = vmatpush1.msra.mxu0 %v100
    %1138 = vmatprep.subr.mxu0 %v105
    %1139 = vmatpush1.msra.mxu0 %v104
    %1140 = vmatprep.subr.mxu0 %v109
    %1141 = vmatpush1.msra.mxu0 %v108
    %1142 = vmatprep.subr.mxu0 0.0
    %1143 = vmatpush1.msra.mxu0 0.0
    %1144 = vmatprep.subr.mxu0 0.0
    %1145 = vmatpush1.msra.mxu0 0.0
    %1146 = vmatprep.subr.mxu0 0.0
    %1147 = vmatpush1.msra.mxu0 0.0
    %1148 = vmatprep.subr.mxu0 0.0
    %1149 = vmatpush1.msra.mxu0 0.0
    %1150 = vmatprep.subr.mxu0 0.0
    %1151 = vmatpush1.msra.mxu0 0.0
    %1152 = vmatprep.subr.mxu0 0.0
    %1153 = vmatpush1.msra.mxu0 0.0
    %1154 = vmatprep.subr.mxu0 0.0
    %1155 = vmatpush1.msra.mxu0 0.0
    %1156 = vmatprep.subr.mxu0 0.0
    %1157 = vmatpush1.msra.mxu0 0.0
    %1158 = vmatprep.subr.mxu0 0.0
    %1159 = vmatpush1.msra.mxu0 0.0
    %1160 = vmatprep.subr.mxu0 0.0
    %1161 = vmatpush1.msra.mxu0 0.0
    %1162 = vmatprep.subr.mxu0 0.0
    %1163 = vmatpush1.msra.mxu0 0.0
    %1164 = vmatprep.subr.mxu0 0.0
    %1165 = vmatpush1.msra.mxu0 0.0
    %1166 = vmatprep.subr.mxu0 0.0
    %1167 = vmatpush1.msra.mxu0 0.0
    %1168 = vmatprep.subr.mxu0 0.0
    %1169 = vmatpush1.msra.mxu0 0.0
    %1170 = vmatprep.subr.mxu0 0.0
    %1171 = vmatpush1.msra.mxu0 0.0
    %1172 = vmatprep.subr.mxu0 0.0
    %1173 = vmatpush1.msra.mxu0 0.0
    %1174 = vmatprep.mubr.f32.mxu0 0.0
    %1175 = vmatmul.mubr.f32.gmra.mrb[0].mxu0 %v1035
    %v1176 = vpop.f32.mrb[0].mxu0
    %v1177 = vadd.f32 0.0, %v1176
    %v1178 = vpop.f32.mrb[0].mxu0
    %v1179 = vadd.f32 0.0, %v1178
    %1180 = vdwg.mxu0
    %v1185 = vcombine.low %v1106, %v1108
    %v1186 = vcombine.low %v1177, %v1179
    %v1189 = vadd.f32 %v1037, %v1185
    %v1190 = vadd.f32 %v1038, %v1186
    %v1191 = vxor.u32 %v1189, 2147483648
    %v1192 = vmul.f32 %v1191, 1.442695
    %v1193 = vpow.pop %v1192
    %v1194 = vadd.f32 %v1193, 1.0
    %v1195 = vrcp.pop %v1194
    %v1196 = vmul.f32 1.0, %v1195
    %v1198 = vrot.slane %v1189, 4
    %v1200 = vxor.u32 %v1198, 2147483648
    %v1201 = vmul.f32 %v1200, 1.442695
    %v1202 = vpow.pop %v1201
    %v1203 = vadd.f32 %v1202, 1.0
    %v1204 = vrcp.pop %v1203
    %v1205 = vmul.f32 1.0, %v1204
    %v1206 = vtanh.pop %v1190
    %v1208 = vrot.slane %v1190, 4
    %v1210 = vxor.u32 %v1208, 2147483648
    %v1211 = vmul.f32 %v1210, 1.442695
    %v1212 = vpow.pop %v1211
    %v1213 = vadd.f32 %v1212, 1.0
    %v1214 = vrcp.pop %v1213
    %v1215 = vmul.f32 1.0, %v1214
    %v1216 = vmul.f32 %v1205, %v1033
    %v1217 = vmul.f32 %v1196, %v1206
    %v1218 = vadd.f32 %v1216, %v1217
    %v1219 = vtanh.pop %v1218
    %v1220 = vmul.f32 %v1215, %v1219
    %s1221 = scalar_lea.vmem [#allocation3], 96
    %v1222 = vld [vmem:[%s1221] sm:$0xff]
    %v1223 = vld [vmem:[%s1221 + $0x8] sm:$0xff]
    %1224 = vmatprep.subr.mxu0 %v47
    %1225 = vmatpush1.msra.mxu0 %v46
    %1226 = vmatprep.subr.mxu0 %v51
    %1227 = vmatpush1.msra.mxu0 %v50
    %1228 = vmatprep.subr.mxu0 %v55
    %1229 = vmatpush1.msra.mxu0 %v54
    %1230 = vmatprep.subr.mxu0 %v59
    %1231 = vmatpush1.msra.mxu0 %v58
    %1232 = vmatprep.subr.mxu0 %v63
    %1233 = vmatpush1.msra.mxu0 %v62
    %1234 = vmatprep.subr.mxu0 %v67
    %1235 = vmatpush1.msra.mxu0 %v66
    %1236 = vmatprep.subr.mxu0 %v71
    %1237 = vmatpush1.msra.mxu0 %v70
    %1238 = vmatprep.subr.mxu0 %v75
    %1239 = vmatpush1.msra.mxu0 %v74
    %1240 = vmatprep.subr.mxu0 %v79
    %1241 = vmatpush1.msra.mxu0 %v78
    %1242 = vmatprep.subr.mxu0 %v83
    %1243 = vmatpush1.msra.mxu0 %v82
    %1244 = vmatprep.subr.mxu0 %v87
    %1245 = vmatpush1.msra.mxu0 %v86
    %1246 = vmatprep.subr.mxu0 %v91
    %1247 = vmatpush1.msra.mxu0 %v90
    %1248 = vmatprep.subr.mxu0 %v95
    %1249 = vmatpush1.msra.mxu0 %v94
    %1250 = vmatprep.subr.mxu0 %v99
    %1251 = vmatpush1.msra.mxu0 %v98
    %1252 = vmatprep.subr.mxu0 %v103
    %1253 = vmatpush1.msra.mxu0 %v102
    %1254 = vmatprep.subr.mxu0 %v107
    %1255 = vmatpush1.msra.mxu0 %v106
    %1256 = vmatprep.subr.mxu0 0.0
    %1257 = vmatpush1.msra.mxu0 0.0
    %1258 = vmatprep.subr.mxu0 0.0
    %1259 = vmatpush1.msra.mxu0 0.0
    %1260 = vmatprep.subr.mxu0 0.0
    %1261 = vmatpush1.msra.mxu0 0.0
    %1262 = vmatprep.subr.mxu0 0.0
    %1263 = vmatpush1.msra.mxu0 0.0
    %1264 = vmatprep.subr.mxu0 0.0
    %1265 = vmatpush1.msra.mxu0 0.0
    %1266 = vmatprep.subr.mxu0 0.0
    %1267 = vmatpush1.msra.mxu0 0.0
    %1268 = vmatprep.subr.mxu0 0.0
    %1269 = vmatpush1.msra.mxu0 0.0
    %1270 = vmatprep.subr.mxu0 0.0
    %1271 = vmatpush1.msra.mxu0 0.0
    %1272 = vmatprep.subr.mxu0 0.0
    %1273 = vmatpush1.msra.mxu0 0.0
    %1274 = vmatprep.subr.mxu0 0.0
    %1275 = vmatpush1.msra.mxu0 0.0
    %1276 = vmatprep.subr.mxu0 0.0
    %1277 = vmatpush1.msra.mxu0 0.0
    %1278 = vmatprep.subr.mxu0 0.0
    %1279 = vmatpush1.msra.mxu0 0.0
    %1280 = vmatprep.subr.mxu0 0.0
    %1281 = vmatpush1.msra.mxu0 0.0
    %1282 = vmatprep.subr.mxu0 0.0
    %1283 = vmatpush1.msra.mxu0 0.0
    %1284 = vmatprep.subr.mxu0 0.0
    %1285 = vmatpush1.msra.mxu0 0.0
    %1286 = vmatprep.subr.mxu0 0.0
    %1287 = vmatpush1.msra.mxu0 0.0
    %1288 = vmatprep.mubr.f32.mxu0 0.0
    %1289 = vmatmul.mubr.f32.gmra.mrb[0].mxu0 %v1220
    %v1290 = vpop.f32.mrb[0].mxu0
    %v1291 = vadd.f32 0.0, %v1290
    %v1292 = vpop.f32.mrb[0].mxu0
    %v1293 = vadd.f32 0.0, %v1292
    %1294 = vdwg.mxu0
    %1295 = vmatprep.subr.mxu0 %v49
    %1296 = vmatpush1.msra.mxu0 %v48
    %1297 = vmatprep.subr.mxu0 %v53
    %1298 = vmatpush1.msra.mxu0 %v52
    %1299 = vmatprep.subr.mxu0 %v57
    %1300 = vmatpush1.msra.mxu0 %v56
    %1301 = vmatprep.subr.mxu0 %v61
    %1302 = vmatpush1.msra.mxu0 %v60
    %1303 = vmatprep.subr.mxu0 %v65
    %1304 = vmatpush1.msra.mxu0 %v64
    %1305 = vmatprep.subr.mxu0 %v69
    %1306 = vmatpush1.msra.mxu0 %v68
    %1307 = vmatprep.subr.mxu0 %v73
    %1308 = vmatpush1.msra.mxu0 %v72
    %1309 = vmatprep.subr.mxu0 %v77
    %1310 = vmatpush1.msra.mxu0 %v76
    %1311 = vmatprep.subr.mxu0 %v81
    %1312 = vmatpush1.msra.mxu0 %v80
    %1313 = vmatprep.subr.mxu0 %v85
    %1314 = vmatpush1.msra.mxu0 %v84
    %1315 = vmatprep.subr.mxu0 %v89
    %1316 = vmatpush1.msra.mxu0 %v88
    %1317 = vmatprep.subr.mxu0 %v93
    %1318 = vmatpush1.msra.mxu0 %v92
    %1319 = vmatprep.subr.mxu0 %v97
    %1320 = vmatpush1.msra.mxu0 %v96
    %1321 = vmatprep.subr.mxu0 %v101
    %1322 = vmatpush1.msra.mxu0 %v100
    %1323 = vmatprep.subr.mxu0 %v105
    %1324 = vmatpush1.msra.mxu0 %v104
    %1325 = vmatprep.subr.mxu0 %v109
    %1326 = vmatpush1.msra.mxu0 %v108
    %1327 = vmatprep.subr.mxu0 0.0
    %1328 = vmatpush1.msra.mxu0 0.0
    %1329 = vmatprep.subr.mxu0 0.0
    %1330 = vmatpush1.msra.mxu0 0.0
    %1331 = vmatprep.subr.mxu0 0.0
    %1332 = vmatpush1.msra.mxu0 0.0
    %1333 = vmatprep.subr.mxu0 0.0
    %1334 = vmatpush1.msra.mxu0 0.0
    %1335 = vmatprep.subr.mxu0 0.0
    %1336 = vmatpush1.msra.mxu0 0.0
    %1337 = vmatprep.subr.mxu0 0.0
    %1338 = vmatpush1.msra.mxu0 0.0
    %1339 = vmatprep.subr.mxu0 0.0
    %1340 = vmatpush1.msra.mxu0 0.0
    %1341 = vmatprep.subr.mxu0 0.0
    %1342 = vmatpush1.msra.mxu0 0.0
    %1343 = vmatprep.subr.mxu0 0.0
    %1344 = vmatpush1.msra.mxu0 0.0
    %1345 = vmatprep.subr.mxu0 0.0
    %1346 = vmatpush1.msra.mxu0 0.0
    %1347 = vmatprep.subr.mxu0 0.0
    %1348 = vmatpush1.msra.mxu0 0.0
    %1349 = vmatprep.subr.mxu0 0.0
    %1350 = vmatpush1.msra.mxu0 0.0
    %1351 = vmatprep.subr.mxu0 0.0
    %1352 = vmatpush1.msra.mxu0 0.0
    %1353 = vmatprep.subr.mxu0 0.0
    %1354 = vmatpush1.msra.mxu0 0.0
    %1355 = vmatprep.subr.mxu0 0.0
    %1356 = vmatpush1.msra.mxu0 0.0
    %1357 = vmatprep.subr.mxu0 0.0
    %1358 = vmatpush1.msra.mxu0 0.0
    %1359 = vmatprep.mubr.f32.mxu0 0.0
    %1360 = vmatmul.mubr.f32.gmra.mrb[0].mxu0 %v1220
    %v1361 = vpop.f32.mrb[0].mxu0
    %v1362 = vadd.f32 0.0, %v1361
    %v1363 = vpop.f32.mrb[0].mxu0
    %v1364 = vadd.f32 0.0, %v1363
    %1365 = vdwg.mxu0
    %v1370 = vcombine.low %v1291, %v1293
    %v1371 = vcombine.low %v1362, %v1364
    %v1374 = vadd.f32 %v1222, %v1370
    %v1375 = vadd.f32 %v1223, %v1371
    %v1376 = vxor.u32 %v1374, 2147483648
    %v1377 = vmul.f32 %v1376, 1.442695
    %v1378 = vpow.pop %v1377
    %v1379 = vadd.f32 %v1378, 1.0
    %v1380 = vrcp.pop %v1379
    %v1381 = vmul.f32 1.0, %v1380
    %v1383 = vrot.slane %v1374, 4
    %v1385 = vxor.u32 %v1383, 2147483648
    %v1386 = vmul.f32 %v1385, 1.442695
    %v1387 = vpow.pop %v1386
    %v1388 = vadd.f32 %v1387, 1.0
    %v1389 = vrcp.pop %v1388
    %v1390 = vmul.f32 1.0, %v1389
    %v1391 = vtanh.pop %v1375
    %v1393 = vrot.slane %v1375, 4
    %v1395 = vxor.u32 %v1393, 2147483648
    %v1396 = vmul.f32 %v1395, 1.442695
    %v1397 = vpow.pop %v1396
    %v1398 = vadd.f32 %v1397, 1.0
    %v1399 = vrcp.pop %v1398
    %v1400 = vmul.f32 1.0, %v1399
    %v1401 = vmul.f32 %v1390, %v1218
    %v1402 = vmul.f32 %v1381, %v1391
    %v1403 = vadd.f32 %v1401, %v1402
    %v1404 = vtanh.pop %v1403
    %v1405 = vmul.f32 %v1400, %v1404
    %s1406 = scalar_lea.vmem [#allocation3], 112
    %v1407 = vld [vmem:[%s1406] sm:$0xff]
    %v1408 = vld [vmem:[%s1406 + $0x8] sm:$0xff]
    %1409 = vmatprep.subr.mxu0 %v47
    %1410 = vmatpush1.msra.mxu0 %v46
    %1411 = vmatprep.subr.mxu0 %v51
    %1412 = vmatpush1.msra.mxu0 %v50
    %1413 = vmatprep.subr.mxu0 %v55
    %1414 = vmatpush1.msra.mxu0 %v54
    %1415 = vmatprep.subr.mxu0 %v59
    %1416 = vmatpush1.msra.mxu0 %v58
    %1417 = vmatprep.subr.mxu0 %v63
    %1418 = vmatpush1.msra.mxu0 %v62
    %1419 = vmatprep.subr.mxu0 %v67
    %1420 = vmatpush1.msra.mxu0 %v66
    %1421 = vmatprep.subr.mxu0 %v71
    %1422 = vmatpush1.msra.mxu0 %v70
    %1423 = vmatprep.subr.mxu0 %v75
    %1424 = vmatpush1.msra.mxu0 %v74
    %1425 = vmatprep.subr.mxu0 %v79
    %1426 = vmatpush1.msra.mxu0 %v78
    %1427 = vmatprep.subr.mxu0 %v83
    %1428 = vmatpush1.msra.mxu0 %v82
    %1429 = vmatprep.subr.mxu0 %v87
    %1430 = vmatpush1.msra.mxu0 %v86
    %1431 = vmatprep.subr.mxu0 %v91
    %1432 = vmatpush1.msra.mxu0 %v90
    %1433 = vmatprep.subr.mxu0 %v95
    %1434 = vmatpush1.msra.mxu0 %v94
    %1435 = vmatprep.subr.mxu0 %v99
    %1436 = vmatpush1.msra.mxu0 %v98
    %1437 = vmatprep.subr.mxu0 %v103
    %1438 = vmatpush1.msra.mxu0 %v102
    %1439 = vmatprep.subr.mxu0 %v107
    %1440 = vmatpush1.msra.mxu0 %v106
    %1441 = vmatprep.subr.mxu0 0.0
    %1442 = vmatpush1.msra.mxu0 0.0
    %1443 = vmatprep.subr.mxu0 0.0
    %1444 = vmatpush1.msra.mxu0 0.0
    %1445 = vmatprep.subr.mxu0 0.0
    %1446 = vmatpush1.msra.mxu0 0.0
    %1447 = vmatprep.subr.mxu0 0.0
    %1448 = vmatpush1.msra.mxu0 0.0
    %1449 = vmatprep.subr.mxu0 0.0
    %1450 = vmatpush1.msra.mxu0 0.0
    %1451 = vmatprep.subr.mxu0 0.0
    %1452 = vmatpush1.msra.mxu0 0.0
    %1453 = vmatprep.subr.mxu0 0.0
    %1454 = vmatpush1.msra.mxu0 0.0
    %1455 = vmatprep.subr.mxu0 0.0
    %1456 = vmatpush1.msra.mxu0 0.0
    %1457 = vmatprep.subr.mxu0 0.0
    %1458 = vmatpush1.msra.mxu0 0.0
    %1459 = vmatprep.subr.mxu0 0.0
    %1460 = vmatpush1.msra.mxu0 0.0
    %1461 = vmatprep.subr.mxu0 0.0
    %1462 = vmatpush1.msra.mxu0 0.0
    %1463 = vmatprep.subr.mxu0 0.0
    %1464 = vmatpush1.msra.mxu0 0.0
    %1465 = vmatprep.subr.mxu0 0.0
    %1466 = vmatpush1.msra.mxu0 0.0
    %1467 = vmatprep.subr.mxu0 0.0
    %1468 = vmatpush1.msra.mxu0 0.0
    %1469 = vmatprep.subr.mxu0 0.0
    %1470 = vmatpush1.msra.mxu0 0.0
    %1471 = vmatprep.subr.mxu0 0.0
    %1472 = vmatpush1.msra.mxu0 0.0
    %1473 = vmatprep.mubr.f32.mxu0 0.0
    %1474 = vmatmul.mubr.f32.gmra.mrb[0].mxu0 %v1405
    %v1475 = vpop.f32.mrb[0].mxu0
    %v1476 = vadd.f32 0.0, %v1475
    %v1477 = vpop.f32.mrb[0].mxu0
    %v1478 = vadd.f32 0.0, %v1477
    %1479 = vdwg.mxu0
    %1480 = vmatprep.subr.mxu0 %v49
    %1481 = vmatpush1.msra.mxu0 %v48
    %1482 = vmatprep.subr.mxu0 %v53
    %1483 = vmatpush1.msra.mxu0 %v52
    %1484 = vmatprep.subr.mxu0 %v57
    %1485 = vmatpush1.msra.mxu0 %v56
    %1486 = vmatprep.subr.mxu0 %v61
    %1487 = vmatpush1.msra.mxu0 %v60
    %1488 = vmatprep.subr.mxu0 %v65
    %1489 = vmatpush1.msra.mxu0 %v64
    %1490 = vmatprep.subr.mxu0 %v69
    %1491 = vmatpush1.msra.mxu0 %v68
    %1492 = vmatprep.subr.mxu0 %v73
    %1493 = vmatpush1.msra.mxu0 %v72
    %1494 = vmatprep.subr.mxu0 %v77
    %1495 = vmatpush1.msra.mxu0 %v76
    %1496 = vmatprep.subr.mxu0 %v81
    %1497 = vmatpush1.msra.mxu0 %v80
    %1498 = vmatprep.subr.mxu0 %v85
    %1499 = vmatpush1.msra.mxu0 %v84
    %1500 = vmatprep.subr.mxu0 %v89
    %1501 = vmatpush1.msra.mxu0 %v88
    %1502 = vmatprep.subr.mxu0 %v93
    %1503 = vmatpush1.msra.mxu0 %v92
    %1504 = vmatprep.subr.mxu0 %v97
    %1505 = vmatpush1.msra.mxu0 %v96
    %1506 = vmatprep.subr.mxu0 %v101
    %1507 = vmatpush1.msra.mxu0 %v100
    %1508 = vmatprep.subr.mxu0 %v105
    %1509 = vmatpush1.msra.mxu0 %v104
    %1510 = vmatprep.subr.mxu0 %v109
    %1511 = vmatpush1.msra.mxu0 %v108
    %1512 = vmatprep.subr.mxu0 0.0
    %1513 = vmatpush1.msra.mxu0 0.0
    %1514 = vmatprep.subr.mxu0 0.0
    %1515 = vmatpush1.msra.mxu0 0.0
    %1516 = vmatprep.subr.mxu0 0.0
    %1517 = vmatpush1.msra.mxu0 0.0
    %1518 = vmatprep.subr.mxu0 0.0
    %1519 = vmatpush1.msra.mxu0 0.0
    %1520 = vmatprep.subr.mxu0 0.0
    %1521 = vmatpush1.msra.mxu0 0.0
    %1522 = vmatprep.subr.mxu0 0.0
    %1523 = vmatpush1.msra.mxu0 0.0
    %1524 = vmatprep.subr.mxu0 0.0
    %1525 = vmatpush1.msra.mxu0 0.0
    %1526 = vmatprep.subr.mxu0 0.0
    %1527 = vmatpush1.msra.mxu0 0.0
    %1528 = vmatprep.subr.mxu0 0.0
    %1529 = vmatpush1.msra.mxu0 0.0
    %1530 = vmatprep.subr.mxu0 0.0
    %1531 = vmatpush1.msra.mxu0 0.0
    %1532 = vmatprep.subr.mxu0 0.0
    %1533 = vmatpush1.msra.mxu0 0.0
    %1534 = vmatprep.subr.mxu0 0.0
    %1535 = vmatpush1.msra.mxu0 0.0
    %1536 = vmatprep.subr.mxu0 0.0
    %1537 = vmatpush1.msra.mxu0 0.0
    %1538 = vmatprep.subr.mxu0 0.0
    %1539 = vmatpush1.msra.mxu0 0.0
    %1540 = vmatprep.subr.mxu0 0.0
    %1541 = vmatpush1.msra.mxu0 0.0
    %1542 = vmatprep.subr.mxu0 0.0
    %1543 = vmatpush1.msra.mxu0 0.0
    %1544 = vmatprep.mubr.f32.mxu0 0.0
    %1545 = vmatmul.mubr.f32.gmra.mrb[0].mxu0 %v1405
    %v1546 = vpop.f32.mrb[0].mxu0
    %v1547 = vadd.f32 0.0, %v1546
    %v1548 = vpop.f32.mrb[0].mxu0
    %v1549 = vadd.f32 0.0, %v1548
    %1550 = vdwg.mxu0
    %v1555 = vcombine.low %v1476, %v1478
    %v1556 = vcombine.low %v1547, %v1549
    %v1559 = vadd.f32 %v1407, %v1555
    %v1560 = vadd.f32 %v1408, %v1556
    %v1561 = vxor.u32 %v1559, 2147483648
    %v1562 = vmul.f32 %v1561, 1.442695
    %v1563 = vpow.pop %v1562
    %v1564 = vadd.f32 %v1563, 1.0
    %v1565 = vrcp.pop %v1564
    %v1566 = vmul.f32 1.0, %v1565
    %v1568 = vrot.slane %v1559, 4
    %v1570 = vxor.u32 %v1568, 2147483648
    %v1571 = vmul.f32 %v1570, 1.442695
    %v1572 = vpow.pop %v1571
    %v1573 = vadd.f32 %v1572, 1.0
    %v1574 = vrcp.pop %v1573
    %v1575 = vmul.f32 1.0, %v1574
    %v1576 = vtanh.pop %v1560
    %v1578 = vrot.slane %v1560, 4
    %v1580 = vxor.u32 %v1578, 2147483648
    %v1581 = vmul.f32 %v1580, 1.442695
    %v1582 = vpow.pop %v1581
    %v1583 = vadd.f32 %v1582, 1.0
    %v1584 = vrcp.pop %v1583
    %v1585 = vmul.f32 1.0, %v1584
    %v1586 = vmul.f32 %v1575, %v1403
    %v1587 = vmul.f32 %v1566, %v1576
    %v1588 = vadd.f32 %v1586, %v1587
    %v1589 = vtanh.pop %v1588
    %v1590 = vmul.f32 %v1585, %v1589
    %1591 = vst [vmem:[#allocation8] sm:$0xf] %v1590
    %1592 = vst [vmem:[#allocation2] sm:$0xf] %v1588
    // Predicated region
    $region22: #{tpu_custom_call.1} parent=1 // pred_check
      _
    $region23: #{tpu_custom_call.1} parent=1 // pred_check_branch
      %1594 = sbr.rel (0) target = $region25
    $region24: #{tpu_custom_call.1} parent=1 // pred_region
      %s1596 = ssub.s32 64, 64
      %1597 = vsyncadd [#allocation5], %s1596
      %s1599 = sshll.u32 [#allocation8], 4
      %s1600 = int_to_ptr.vmem [resolvable:$true] %s1599
      %1602 = dma.vmem_to_hbm [thread:$0]  %s1600, 64, %s2, [#allocation5]
    $region25: #{tpu_custom_call.1} parent=1 // pred_fallthru
      _
    // Predicated region
    $region26: #{tpu_custom_call.1} parent=1 // pred_check
      _
    $region27: #{tpu_custom_call.1} parent=1 // pred_check_branch
      %1604 = sbr.rel (0) target = $region29
    $region28: #{tpu_custom_call.1} parent=1 // pred_region
      %1605 = dma.done [#allocation5], 64
    $region29: #{tpu_custom_call.1} parent=1 // pred_fallthru
      _
    %1606 = vsyncpa [#allocation4], 1
    %1607 = vsyncpa [#allocation7], 1
    %1608 = vsyncpa [#allocation5], 1

</llo_original>
